<compile_context>
chip_gen: v7x
topology: tpu7x:2x2x1
jax: 0.10.0
libtpu: 0.0.40
codegen_flags: <defaults>
</compile_context>

<pallas_src>
import jax
import jax.numpy as jnp
from jax.experimental import pallas as pl
from jax.experimental.pallas import tpu as pltpu

START_TAG = "<START_TAG>"
END_TAG = "<END_TAG>"

# Deterministic synthetic tag set (module's params.bio_tags)
BIO_TAGS = ["O", "B-PER", "I-PER", "B-LOC", "I-LOC", "[PAD]", START_TAG, END_TAG]
TAG2IDX = {t: i for i, t in enumerate(BIO_TAGS)}
TAG_SIZE = len(BIO_TAGS)
START_IDX = TAG2IDX[START_TAG]
END_IDX = TAG2IDX[END_TAG]


def _make_kernel(start_idx, end_idx, seq_len, tag_size, batch_size):
    T, B = tag_size, batch_size

    def crf_forward_kernel(feats_ref, mask_ref, trans_ref, out_ref):
        # transition is tiny (T, T); load once, hoist its (T_next, T_prev, B)
        # broadcast out of the time loop.
        trans = trans_ref[...].astype(jnp.float32)                    # (T, T)
        trans_b = jnp.broadcast_to(trans[:, :, None], (T, T, B))      # (T, T, B)
        end_row = trans[end_idx, :][:, None]                          # (T, 1)

        # alpha[prev_tag, b]: START row = 0, others = -10000.
        # iota + select (pure VPU) instead of an in-kernel scatter.
        row_ids = jax.lax.broadcasted_iota(jnp.int32, (T, B), 0)
        alpha0 = jnp.where(row_ids == start_idx,
                           jnp.float32(0.0), jnp.float32(-10000.0))

        def step(t, alpha):
            feat = feats_ref[t].astype(jnp.float32)                   # (T, B) emit scores
            m_t = mask_ref[t].astype(jnp.float32)                     # (B,)
            # score[next, prev, b] = alpha[prev, b] + trans[next, prev] + feat[next, b]
            score = trans_b + alpha[None, :, :] + feat[:, None, :]    # (T, T, B)
            # numerically-stable logsumexp over prev-tag (sublane) axis
            mx = jnp.max(score, axis=1)                               # (T, B)
            new_alpha = mx + jnp.log(
                jnp.sum(jnp.exp(score - mx[:, None, :]), axis=1))     # (T, B)
            # NaN-safe select instead of multiplicative mask blend
            return jnp.where(m_t[None, :] > 0.0, new_alpha, alpha)

        alpha = jax.lax.fori_loop(0, seq_len, step, alpha0, unroll=True)

        # add transition-to-END and reduce over tags
        final = alpha + end_row                                       # (T, B)
        m2 = jnp.max(final, axis=0)                                   # (B,)
        scores = m2 + jnp.log(jnp.sum(jnp.exp(final - m2[None, :]), axis=0))
        out_ref[...] = scores[None, :]                                # lane-dense (1, B)

    return crf_forward_kernel


def crf_forward(feats, mask, transition):
    """feats: (S, B, T), mask: (S, B) {0,1}, transition: (T, T) -> (B,) f32."""
    S, B, T = feats.shape
    # Layout plumbing in the wrapper: put batch on the lane axis.  Do NOT upcast
    # feats here (keep native dtype in HBM; cast in-kernel after the DMA).
    feats_t = jnp.transpose(feats, (0, 2, 1))     # (S, T, B)
    mask_f = mask.astype(jnp.float32)             # (S, B)

    kernel = _make_kernel(START_IDX, END_IDX, S, T, B)

    out = pl.pallas_call(
        kernel,
        out_shape=jax.ShapeDtypeStruct((1, B), jnp.float32),
        in_specs=[
            pl.BlockSpec(memory_space=pltpu.MemorySpace.VMEM),   # feats (S, T, B) resident
            pl.BlockSpec(memory_space=pltpu.MemorySpace.VMEM),   # mask  (S, B)    resident
            pl.BlockSpec(memory_space=pltpu.MemorySpace.VMEM),   # transition (T, T)
        ],
        out_specs=pl.BlockSpec(memory_space=pltpu.MemorySpace.VMEM),
    )(feats_t, mask_f, transition.astype(jnp.float32))
    return out[0]


def crf_forward_ref(feats, mask, transition):
    """Pure-JAX reference (mirrors the PyTorch forward)."""
    S, B, T = feats.shape
    alpha = jnp.full((B, T), -10000.0, dtype=jnp.float32).at[:, START_IDX].set(0.0)

    def step(alpha, inp):
        feat, m = inp
        score = alpha[:, None, :] + transition[None, :, :] + feat[:, :, None]
        new_alpha = jax.scipy.special.logsumexp(score, axis=-1)
        m_b = m[:, None]
        alpha = jnp.where(m_b > 0, new_alpha, alpha)
        return alpha, None

    alpha, _ = jax.lax.scan(step, alpha, (feats.astype(jnp.float32),
                                          mask.astype(jnp.float32)))
    alpha = alpha + transition[END_IDX][None, :]
    return jax.scipy.special.logsumexp(alpha, axis=-1)


def init_transition(key, tag_size):
    """Xavier-normal init, then START row = -10000 and END column = -10000."""
    std = (2.0 / (tag_size + tag_size)) ** 0.5
    trans = jax.random.normal(key, (tag_size, tag_size), dtype=jnp.float32) * std
    trans = trans.at[START_IDX, :].set(-10000.0)
    trans = trans.at[:, END_IDX].set(-10000.0)
    return trans


if __name__ == "__main__":
    key = jax.random.PRNGKey(0)
    k_trans, k_feats = jax.random.split(key, 2)

    seq_len, batch_size = 8, 4
    transition = init_transition(k_trans, TAG_SIZE)
    feats = jax.random.normal(k_feats, (seq_len, batch_size, TAG_SIZE), dtype=jnp.float32)

    # valid lengths per batch element -> mask (seq_len, batch)
    lengths = jnp.array([8, 5, 3, 6], dtype=jnp.int32)
    mask = (jnp.arange(seq_len)[:, None] < lengths[None, :]).astype(jnp.float32)

    out = crf_forward(feats, mask, transition)
    out = jax.block_until_ready(out)

    ref = crf_forward_ref(feats, mask, transition)
    assert out.shape == (batch_size,)
    assert jnp.allclose(out, ref, rtol=1e-4, atol=1e-4), (out, ref)

    print("KERNEL_OK")
</pallas_src>

<mosaic_0001>
module attributes {stable_mosaic.version = 11 : i64} {
  func.func @crf_forward_kernel(%arg0: memref<8x8x4xf32, #tpu.memory_space<vmem>>, %arg1: memref<8x4xf32, #tpu.memory_space<vmem>>, %arg2: memref<8x8xf32, #tpu.memory_space<vmem>>, %arg3: memref<1x4xf32, #tpu.memory_space<vmem>>) attributes {dimension_semantics = [], scalar_prefetch = 0 : i64, scratch_operands = 0 : i64, tpu.core_type = #tpu.core_type<tc>} {
    %c0 = arith.constant 0 : index
    %c0_0 = arith.constant 0 : index
    %0 = vector.load %arg2[%c0, %c0_0] : memref<8x8xf32, #tpu.memory_space<vmem>>, vector<8x8xf32>
    %1 = vector.shape_cast %0 : vector<8x8xf32> to vector<8x8x1xf32>
    %2 = vector.shape_cast %1 : vector<8x8x1xf32> to vector<8x8x1xf32>
    %3 = vector.broadcast %2 : vector<8x8x1xf32> to vector<8x8x4xf32>
    %4 = vector.extract_strided_slice %0 {offsets = [7, 0], sizes = [1, 8], strides = [1, 1]} : vector<8x8xf32> to vector<1x8xf32>
    %5 = vector.shape_cast %4 : vector<1x8xf32> to vector<8xf32>
    %6 = vector.shape_cast %5 : vector<8xf32> to vector<8x1xf32>
    %7 = tpu.iota {dimensions = array<i32: 0>} : vector<8x4xi32>
    %c6_i32 = arith.constant 6 : i32
    %8 = vector.broadcast %c6_i32 : i32 to vector<8x4xi32>
    %9 = arith.cmpi eq, %7, %8 : vector<8x4xi32>
    %cst = arith.constant 0.000000e+00 : f32
    %cst_1 = arith.constant -1.000000e+04 : f32
    %10 = vector.broadcast %cst : f32 to vector<8x4xf32>
    %11 = vector.broadcast %cst_1 : f32 to vector<8x4xf32>
    %12 = arith.select %9, %10, %11 : vector<8x4xi1>, vector<8x4xf32>
    %c0_i32 = arith.constant 0 : i32
    %13 = arith.index_cast %c0_i32 : i32 to index
    %c0_2 = arith.constant 0 : index
    %c0_3 = arith.constant 0 : index
    %14 = vector.load %arg0[%13, %c0_2, %c0_3] : memref<8x8x4xf32, #tpu.memory_space<vmem>>, vector<1x8x4xf32>
    %15 = vector.shape_cast %14 : vector<1x8x4xf32> to vector<8x4xf32>
    %16 = arith.index_cast %c0_i32 : i32 to index
    %c0_4 = arith.constant 0 : index
    %17 = vector.load %arg1[%16, %c0_4] : memref<8x4xf32, #tpu.memory_space<vmem>>, vector<1x4xf32>
    %18 = vector.shape_cast %17 : vector<1x4xf32> to vector<4xf32>
    %19 = vector.shape_cast %12 : vector<8x4xf32> to vector<1x8x4xf32>
    %20 = vector.broadcast %19 : vector<1x8x4xf32> to vector<8x8x4xf32>
    %21 = arith.addf %3, %20 : vector<8x8x4xf32>
    %22 = vector.shape_cast %15 : vector<8x4xf32> to vector<8x1x4xf32>
    %23 = vector.broadcast %22 : vector<8x1x4xf32> to vector<8x8x4xf32>
    %24 = arith.addf %21, %23 : vector<8x8x4xf32>
    %cst_5 = arith.constant dense<0xFF800000> : vector<8x4xf32>
    %25 = vector.multi_reduction <maximumf>, %24, %cst_5 [1] : vector<8x8x4xf32> to vector<8x4xf32>
    %26 = vector.shape_cast %25 : vector<8x4xf32> to vector<8x1x4xf32>
    %27 = vector.broadcast %26 : vector<8x1x4xf32> to vector<8x8x4xf32>
    %28 = arith.subf %24, %27 : vector<8x8x4xf32>
    %29 = math.exp %28 : vector<8x8x4xf32>
    %cst_6 = arith.constant dense<0.000000e+00> : vector<8x4xf32>
    %30 = vector.multi_reduction <add>, %29, %cst_6 [1] : vector<8x8x4xf32> to vector<8x4xf32>
    %31 = math.log %30 : vector<8x4xf32>
    %32 = arith.addf %25, %31 : vector<8x4xf32>
    %33 = vector.shape_cast %18 : vector<4xf32> to vector<1x4xf32>
    %cst_7 = arith.constant 0.000000e+00 : f32
    %34 = vector.broadcast %cst_7 : f32 to vector<1x4xf32>
    %35 = arith.cmpf ogt, %33, %34 : vector<1x4xf32>
    %36 = vector.shape_cast %35 : vector<1x4xi1> to vector<1x4xi1>
    %37 = vector.broadcast %36 : vector<1x4xi1> to vector<8x4xi1>
    %38 = arith.select %37, %32, %12 : vector<8x4xi1>, vector<8x4xf32>
    %c1_i32 = arith.constant 1 : i32
    %39 = arith.index_cast %c1_i32 : i32 to index
    %c0_8 = arith.constant 0 : index
    %c0_9 = arith.constant 0 : index
    %40 = vector.load %arg0[%39, %c0_8, %c0_9] : memref<8x8x4xf32, #tpu.memory_space<vmem>>, vector<1x8x4xf32>
    %41 = vector.shape_cast %40 : vector<1x8x4xf32> to vector<8x4xf32>
    %42 = arith.index_cast %c1_i32 : i32 to index
    %c0_10 = arith.constant 0 : index
    %43 = vector.load %arg1[%42, %c0_10] : memref<8x4xf32, #tpu.memory_space<vmem>>, vector<1x4xf32>
    %44 = vector.shape_cast %43 : vector<1x4xf32> to vector<4xf32>
    %45 = vector.shape_cast %38 : vector<8x4xf32> to vector<1x8x4xf32>
    %46 = vector.broadcast %45 : vector<1x8x4xf32> to vector<8x8x4xf32>
    %47 = arith.addf %3, %46 : vector<8x8x4xf32>
    %48 = vector.shape_cast %41 : vector<8x4xf32> to vector<8x1x4xf32>
    %49 = vector.broadcast %48 : vector<8x1x4xf32> to vector<8x8x4xf32>
    %50 = arith.addf %47, %49 : vector<8x8x4xf32>
    %cst_11 = arith.constant dense<0xFF800000> : vector<8x4xf32>
    %51 = vector.multi_reduction <maximumf>, %50, %cst_11 [1] : vector<8x8x4xf32> to vector<8x4xf32>
    %52 = vector.shape_cast %51 : vector<8x4xf32> to vector<8x1x4xf32>
    %53 = vector.broadcast %52 : vector<8x1x4xf32> to vector<8x8x4xf32>
    %54 = arith.subf %50, %53 : vector<8x8x4xf32>
    %55 = math.exp %54 : vector<8x8x4xf32>
    %cst_12 = arith.constant dense<0.000000e+00> : vector<8x4xf32>
    %56 = vector.multi_reduction <add>, %55, %cst_12 [1] : vector<8x8x4xf32> to vector<8x4xf32>
    %57 = math.log %56 : vector<8x4xf32>
    %58 = arith.addf %51, %57 : vector<8x4xf32>
    %59 = vector.shape_cast %44 : vector<4xf32> to vector<1x4xf32>
    %cst_13 = arith.constant 0.000000e+00 : f32
    %60 = vector.broadcast %cst_13 : f32 to vector<1x4xf32>
    %61 = arith.cmpf ogt, %59, %60 : vector<1x4xf32>
    %62 = vector.shape_cast %61 : vector<1x4xi1> to vector<1x4xi1>
    %63 = vector.broadcast %62 : vector<1x4xi1> to vector<8x4xi1>
    %64 = arith.select %63, %58, %38 : vector<8x4xi1>, vector<8x4xf32>
    %c2_i32 = arith.constant 2 : i32
    %65 = arith.index_cast %c2_i32 : i32 to index
    %c0_14 = arith.constant 0 : index
    %c0_15 = arith.constant 0 : index
    %66 = vector.load %arg0[%65, %c0_14, %c0_15] : memref<8x8x4xf32, #tpu.memory_space<vmem>>, vector<1x8x4xf32>
    %67 = vector.shape_cast %66 : vector<1x8x4xf32> to vector<8x4xf32>
    %68 = arith.index_cast %c2_i32 : i32 to index
    %c0_16 = arith.constant 0 : index
    %69 = vector.load %arg1[%68, %c0_16] : memref<8x4xf32, #tpu.memory_space<vmem>>, vector<1x4xf32>
    %70 = vector.shape_cast %69 : vector<1x4xf32> to vector<4xf32>
    %71 = vector.shape_cast %64 : vector<8x4xf32> to vector<1x8x4xf32>
    %72 = vector.broadcast %71 : vector<1x8x4xf32> to vector<8x8x4xf32>
    %73 = arith.addf %3, %72 : vector<8x8x4xf32>
    %74 = vector.shape_cast %67 : vector<8x4xf32> to vector<8x1x4xf32>
    %75 = vector.broadcast %74 : vector<8x1x4xf32> to vector<8x8x4xf32>
    %76 = arith.addf %73, %75 : vector<8x8x4xf32>
    %cst_17 = arith.constant dense<0xFF800000> : vector<8x4xf32>
    %77 = vector.multi_reduction <maximumf>, %76, %cst_17 [1] : vector<8x8x4xf32> to vector<8x4xf32>
    %78 = vector.shape_cast %77 : vector<8x4xf32> to vector<8x1x4xf32>
    %79 = vector.broadcast %78 : vector<8x1x4xf32> to vector<8x8x4xf32>
    %80 = arith.subf %76, %79 : vector<8x8x4xf32>
    %81 = math.exp %80 : vector<8x8x4xf32>
    %cst_18 = arith.constant dense<0.000000e+00> : vector<8x4xf32>
    %82 = vector.multi_reduction <add>, %81, %cst_18 [1] : vector<8x8x4xf32> to vector<8x4xf32>
    %83 = math.log %82 : vector<8x4xf32>
    %84 = arith.addf %77, %83 : vector<8x4xf32>
    %85 = vector.shape_cast %70 : vector<4xf32> to vector<1x4xf32>
    %cst_19 = arith.constant 0.000000e+00 : f32
    %86 = vector.broadcast %cst_19 : f32 to vector<1x4xf32>
    %87 = arith.cmpf ogt, %85, %86 : vector<1x4xf32>
    %88 = vector.shape_cast %87 : vector<1x4xi1> to vector<1x4xi1>
    %89 = vector.broadcast %88 : vector<1x4xi1> to vector<8x4xi1>
    %90 = arith.select %89, %84, %64 : vector<8x4xi1>, vector<8x4xf32>
    %c3_i32 = arith.constant 3 : i32
    %91 = arith.index_cast %c3_i32 : i32 to index
    %c0_20 = arith.constant 0 : index
    %c0_21 = arith.constant 0 : index
    %92 = vector.load %arg0[%91, %c0_20, %c0_21] : memref<8x8x4xf32, #tpu.memory_space<vmem>>, vector<1x8x4xf32>
    %93 = vector.shape_cast %92 : vector<1x8x4xf32> to vector<8x4xf32>
    %94 = arith.index_cast %c3_i32 : i32 to index
    %c0_22 = arith.constant 0 : index
    %95 = vector.load %arg1[%94, %c0_22] : memref<8x4xf32, #tpu.memory_space<vmem>>, vector<1x4xf32>
    %96 = vector.shape_cast %95 : vector<1x4xf32> to vector<4xf32>
    %97 = vector.shape_cast %90 : vector<8x4xf32> to vector<1x8x4xf32>
    %98 = vector.broadcast %97 : vector<1x8x4xf32> to vector<8x8x4xf32>
    %99 = arith.addf %3, %98 : vector<8x8x4xf32>
    %100 = vector.shape_cast %93 : vector<8x4xf32> to vector<8x1x4xf32>
    %101 = vector.broadcast %100 : vector<8x1x4xf32> to vector<8x8x4xf32>
    %102 = arith.addf %99, %101 : vector<8x8x4xf32>
    %cst_23 = arith.constant dense<0xFF800000> : vector<8x4xf32>
    %103 = vector.multi_reduction <maximumf>, %102, %cst_23 [1] : vector<8x8x4xf32> to vector<8x4xf32>
    %104 = vector.shape_cast %103 : vector<8x4xf32> to vector<8x1x4xf32>
    %105 = vector.broadcast %104 : vector<8x1x4xf32> to vector<8x8x4xf32>
    %106 = arith.subf %102, %105 : vector<8x8x4xf32>
    %107 = math.exp %106 : vector<8x8x4xf32>
    %cst_24 = arith.constant dense<0.000000e+00> : vector<8x4xf32>
    %108 = vector.multi_reduction <add>, %107, %cst_24 [1] : vector<8x8x4xf32> to vector<8x4xf32>
    %109 = math.log %108 : vector<8x4xf32>
    %110 = arith.addf %103, %109 : vector<8x4xf32>
    %111 = vector.shape_cast %96 : vector<4xf32> to vector<1x4xf32>
    %cst_25 = arith.constant 0.000000e+00 : f32
    %112 = vector.broadcast %cst_25 : f32 to vector<1x4xf32>
    %113 = arith.cmpf ogt, %111, %112 : vector<1x4xf32>
    %114 = vector.shape_cast %113 : vector<1x4xi1> to vector<1x4xi1>
    %115 = vector.broadcast %114 : vector<1x4xi1> to vector<8x4xi1>
    %116 = arith.select %115, %110, %90 : vector<8x4xi1>, vector<8x4xf32>
    %c4_i32 = arith.constant 4 : i32
    %117 = arith.index_cast %c4_i32 : i32 to index
    %c0_26 = arith.constant 0 : index
    %c0_27 = arith.constant 0 : index
    %118 = vector.load %arg0[%117, %c0_26, %c0_27] : memref<8x8x4xf32, #tpu.memory_space<vmem>>, vector<1x8x4xf32>
    %119 = vector.shape_cast %118 : vector<1x8x4xf32> to vector<8x4xf32>
    %120 = arith.index_cast %c4_i32 : i32 to index
    %c0_28 = arith.constant 0 : index
    %121 = vector.load %arg1[%120, %c0_28] : memref<8x4xf32, #tpu.memory_space<vmem>>, vector<1x4xf32>
    %122 = vector.shape_cast %121 : vector<1x4xf32> to vector<4xf32>
    %123 = vector.shape_cast %116 : vector<8x4xf32> to vector<1x8x4xf32>
    %124 = vector.broadcast %123 : vector<1x8x4xf32> to vector<8x8x4xf32>
    %125 = arith.addf %3, %124 : vector<8x8x4xf32>
    %126 = vector.shape_cast %119 : vector<8x4xf32> to vector<8x1x4xf32>
    %127 = vector.broadcast %126 : vector<8x1x4xf32> to vector<8x8x4xf32>
    %128 = arith.addf %125, %127 : vector<8x8x4xf32>
    %cst_29 = arith.constant dense<0xFF800000> : vector<8x4xf32>
    %129 = vector.multi_reduction <maximumf>, %128, %cst_29 [1] : vector<8x8x4xf32> to vector<8x4xf32>
    %130 = vector.shape_cast %129 : vector<8x4xf32> to vector<8x1x4xf32>
    %131 = vector.broadcast %130 : vector<8x1x4xf32> to vector<8x8x4xf32>
    %132 = arith.subf %128, %131 : vector<8x8x4xf32>
    %133 = math.exp %132 : vector<8x8x4xf32>
    %cst_30 = arith.constant dense<0.000000e+00> : vector<8x4xf32>
    %134 = vector.multi_reduction <add>, %133, %cst_30 [1] : vector<8x8x4xf32> to vector<8x4xf32>
    %135 = math.log %134 : vector<8x4xf32>
    %136 = arith.addf %129, %135 : vector<8x4xf32>
    %137 = vector.shape_cast %122 : vector<4xf32> to vector<1x4xf32>
    %cst_31 = arith.constant 0.000000e+00 : f32
    %138 = vector.broadcast %cst_31 : f32 to vector<1x4xf32>
    %139 = arith.cmpf ogt, %137, %138 : vector<1x4xf32>
    %140 = vector.shape_cast %139 : vector<1x4xi1> to vector<1x4xi1>
    %141 = vector.broadcast %140 : vector<1x4xi1> to vector<8x4xi1>
    %142 = arith.select %141, %136, %116 : vector<8x4xi1>, vector<8x4xf32>
    %c5_i32 = arith.constant 5 : i32
    %143 = arith.index_cast %c5_i32 : i32 to index
    %c0_32 = arith.constant 0 : index
    %c0_33 = arith.constant 0 : index
    %144 = vector.load %arg0[%143, %c0_32, %c0_33] : memref<8x8x4xf32, #tpu.memory_space<vmem>>, vector<1x8x4xf32>
    %145 = vector.shape_cast %144 : vector<1x8x4xf32> to vector<8x4xf32>
    %146 = arith.index_cast %c5_i32 : i32 to index
    %c0_34 = arith.constant 0 : index
    %147 = vector.load %arg1[%146, %c0_34] : memref<8x4xf32, #tpu.memory_space<vmem>>, vector<1x4xf32>
    %148 = vector.shape_cast %147 : vector<1x4xf32> to vector<4xf32>
    %149 = vector.shape_cast %142 : vector<8x4xf32> to vector<1x8x4xf32>
    %150 = vector.broadcast %149 : vector<1x8x4xf32> to vector<8x8x4xf32>
    %151 = arith.addf %3, %150 : vector<8x8x4xf32>
    %152 = vector.shape_cast %145 : vector<8x4xf32> to vector<8x1x4xf32>
    %153 = vector.broadcast %152 : vector<8x1x4xf32> to vector<8x8x4xf32>
    %154 = arith.addf %151, %153 : vector<8x8x4xf32>
    %cst_35 = arith.constant dense<0xFF800000> : vector<8x4xf32>
    %155 = vector.multi_reduction <maximumf>, %154, %cst_35 [1] : vector<8x8x4xf32> to vector<8x4xf32>
    %156 = vector.shape_cast %155 : vector<8x4xf32> to vector<8x1x4xf32>
    %157 = vector.broadcast %156 : vector<8x1x4xf32> to vector<8x8x4xf32>
    %158 = arith.subf %154, %157 : vector<8x8x4xf32>
    %159 = math.exp %158 : vector<8x8x4xf32>
    %cst_36 = arith.constant dense<0.000000e+00> : vector<8x4xf32>
    %160 = vector.multi_reduction <add>, %159, %cst_36 [1] : vector<8x8x4xf32> to vector<8x4xf32>
    %161 = math.log %160 : vector<8x4xf32>
    %162 = arith.addf %155, %161 : vector<8x4xf32>
    %163 = vector.shape_cast %148 : vector<4xf32> to vector<1x4xf32>
    %cst_37 = arith.constant 0.000000e+00 : f32
    %164 = vector.broadcast %cst_37 : f32 to vector<1x4xf32>
    %165 = arith.cmpf ogt, %163, %164 : vector<1x4xf32>
    %166 = vector.shape_cast %165 : vector<1x4xi1> to vector<1x4xi1>
    %167 = vector.broadcast %166 : vector<1x4xi1> to vector<8x4xi1>
    %168 = arith.select %167, %162, %142 : vector<8x4xi1>, vector<8x4xf32>
    %c6_i32_38 = arith.constant 6 : i32
    %169 = arith.index_cast %c6_i32_38 : i32 to index
    %c0_39 = arith.constant 0 : index
    %c0_40 = arith.constant 0 : index
    %170 = vector.load %arg0[%169, %c0_39, %c0_40] : memref<8x8x4xf32, #tpu.memory_space<vmem>>, vector<1x8x4xf32>
    %171 = vector.shape_cast %170 : vector<1x8x4xf32> to vector<8x4xf32>
    %172 = arith.index_cast %c6_i32_38 : i32 to index
    %c0_41 = arith.constant 0 : index
    %173 = vector.load %arg1[%172, %c0_41] : memref<8x4xf32, #tpu.memory_space<vmem>>, vector<1x4xf32>
    %174 = vector.shape_cast %173 : vector<1x4xf32> to vector<4xf32>
    %175 = vector.shape_cast %168 : vector<8x4xf32> to vector<1x8x4xf32>
    %176 = vector.broadcast %175 : vector<1x8x4xf32> to vector<8x8x4xf32>
    %177 = arith.addf %3, %176 : vector<8x8x4xf32>
    %178 = vector.shape_cast %171 : vector<8x4xf32> to vector<8x1x4xf32>
    %179 = vector.broadcast %178 : vector<8x1x4xf32> to vector<8x8x4xf32>
    %180 = arith.addf %177, %179 : vector<8x8x4xf32>
    %cst_42 = arith.constant dense<0xFF800000> : vector<8x4xf32>
    %181 = vector.multi_reduction <maximumf>, %180, %cst_42 [1] : vector<8x8x4xf32> to vector<8x4xf32>
    %182 = vector.shape_cast %181 : vector<8x4xf32> to vector<8x1x4xf32>
    %183 = vector.broadcast %182 : vector<8x1x4xf32> to vector<8x8x4xf32>
    %184 = arith.subf %180, %183 : vector<8x8x4xf32>
    %185 = math.exp %184 : vector<8x8x4xf32>
    %cst_43 = arith.constant dense<0.000000e+00> : vector<8x4xf32>
    %186 = vector.multi_reduction <add>, %185, %cst_43 [1] : vector<8x8x4xf32> to vector<8x4xf32>
    %187 = math.log %186 : vector<8x4xf32>
    %188 = arith.addf %181, %187 : vector<8x4xf32>
    %189 = vector.shape_cast %174 : vector<4xf32> to vector<1x4xf32>
    %cst_44 = arith.constant 0.000000e+00 : f32
    %190 = vector.broadcast %cst_44 : f32 to vector<1x4xf32>
    %191 = arith.cmpf ogt, %189, %190 : vector<1x4xf32>
    %192 = vector.shape_cast %191 : vector<1x4xi1> to vector<1x4xi1>
    %193 = vector.broadcast %192 : vector<1x4xi1> to vector<8x4xi1>
    %194 = arith.select %193, %188, %168 : vector<8x4xi1>, vector<8x4xf32>
    %c7_i32 = arith.constant 7 : i32
    %195 = arith.index_cast %c7_i32 : i32 to index
    %c0_45 = arith.constant 0 : index
    %c0_46 = arith.constant 0 : index
    %196 = vector.load %arg0[%195, %c0_45, %c0_46] : memref<8x8x4xf32, #tpu.memory_space<vmem>>, vector<1x8x4xf32>
    %197 = vector.shape_cast %196 : vector<1x8x4xf32> to vector<8x4xf32>
    %198 = arith.index_cast %c7_i32 : i32 to index
    %c0_47 = arith.constant 0 : index
    %199 = vector.load %arg1[%198, %c0_47] : memref<8x4xf32, #tpu.memory_space<vmem>>, vector<1x4xf32>
    %200 = vector.shape_cast %199 : vector<1x4xf32> to vector<4xf32>
    %201 = vector.shape_cast %194 : vector<8x4xf32> to vector<1x8x4xf32>
    %202 = vector.broadcast %201 : vector<1x8x4xf32> to vector<8x8x4xf32>
    %203 = arith.addf %3, %202 : vector<8x8x4xf32>
    %204 = vector.shape_cast %197 : vector<8x4xf32> to vector<8x1x4xf32>
    %205 = vector.broadcast %204 : vector<8x1x4xf32> to vector<8x8x4xf32>
    %206 = arith.addf %203, %205 : vector<8x8x4xf32>
    %cst_48 = arith.constant dense<0xFF800000> : vector<8x4xf32>
    %207 = vector.multi_reduction <maximumf>, %206, %cst_48 [1] : vector<8x8x4xf32> to vector<8x4xf32>
    %208 = vector.shape_cast %207 : vector<8x4xf32> to vector<8x1x4xf32>
    %209 = vector.broadcast %208 : vector<8x1x4xf32> to vector<8x8x4xf32>
    %210 = arith.subf %206, %209 : vector<8x8x4xf32>
    %211 = math.exp %210 : vector<8x8x4xf32>
    %cst_49 = arith.constant dense<0.000000e+00> : vector<8x4xf32>
    %212 = vector.multi_reduction <add>, %211, %cst_49 [1] : vector<8x8x4xf32> to vector<8x4xf32>
    %213 = math.log %212 : vector<8x4xf32>
    %214 = arith.addf %207, %213 : vector<8x4xf32>
    %215 = vector.shape_cast %200 : vector<4xf32> to vector<1x4xf32>
    %cst_50 = arith.constant 0.000000e+00 : f32
    %216 = vector.broadcast %cst_50 : f32 to vector<1x4xf32>
    %217 = arith.cmpf ogt, %215, %216 : vector<1x4xf32>
    %218 = vector.shape_cast %217 : vector<1x4xi1> to vector<1x4xi1>
    %219 = vector.broadcast %218 : vector<1x4xi1> to vector<8x4xi1>
    %220 = arith.select %219, %214, %194 : vector<8x4xi1>, vector<8x4xf32>
    %c8_i32 = arith.constant 8 : i32
    %221 = vector.broadcast %6 : vector<8x1xf32> to vector<8x4xf32>
    %222 = arith.addf %220, %221 : vector<8x4xf32>
    %cst_51 = arith.constant dense<0xFF800000> : vector<4xf32>
    %223 = vector.multi_reduction <maximumf>, %222, %cst_51 [0] : vector<8x4xf32> to vector<4xf32>
    %224 = vector.shape_cast %223 : vector<4xf32> to vector<1x4xf32>
    %225 = vector.broadcast %224 : vector<1x4xf32> to vector<8x4xf32>
    %226 = arith.subf %222, %225 : vector<8x4xf32>
    %227 = math.exp %226 : vector<8x4xf32>
    %cst_52 = arith.constant dense<0.000000e+00> : vector<4xf32>
    %228 = vector.multi_reduction <add>, %227, %cst_52 [0] : vector<8x4xf32> to vector<4xf32>
    %229 = math.log %228 : vector<4xf32>
    %230 = arith.addf %223, %229 : vector<4xf32>
    %231 = vector.shape_cast %230 : vector<4xf32> to vector<1x4xf32>
    %c0_53 = arith.constant 0 : index
    %c0_54 = arith.constant 0 : index
    %232 = vector.load %arg3[%c0_53, %c0_54] : memref<1x4xf32, #tpu.memory_space<vmem>>, vector<1x4xf32>
    tpu.vector_store %arg3[%c0_53, %c0_54], %231 {strides = array<i32>} : memref<1x4xf32, #tpu.memory_space<vmem>>, vector<1x4xf32>,
    return
  }
}

</mosaic_0001>

<llo_original>
// kernel: tpu_custom_call.1
$region0: #{tpu_custom_call.1}
  #allocation0 [shape = 'u32[]', space=smem, size = 0x4, offset = 0x4, fixed_abs, tag = 'smem constant byte address 0x4 - core index']
  #allocation1 [shape = 'u32[144,128]{1,0:T(1,128)}', space=vmem, size = 0x12000, scoped, tag = 'internal scratch']
  %s0 = inlined_call_operand.vmem [shape: f32[8,8,4], index: 0, kind: input, shape index: {}]
  %s1 = inlined_call_operand.vmem [shape: f32[8,4], index: 1, kind: input, shape index: {}]
  %s2 = inlined_call_operand.vmem [shape: f32[8,8], index: 2, kind: input, shape index: {}]
  %s3 = inlined_call_operand.hbm [shape: f32[1,4], index: 3, kind: output, shape index: {}]
  %s4 = sld [smem:[#allocation0]]
  $region22: #{tpu_custom_call.1} parent=0
    _
  %s6 = ssub.s32 1, %s4
  %s7 = scalar_select 0, %s6, %s4
  $region1: #{tpu_custom_call.1} parent=0
    #allocation2 [shape = 'u8[512]{0}', space=vmem, size = 0x400, scoped, tag = 'output window, operand 0, single buffered']
    #allocation3 [shape = 's32[1]{0}', space=sflag, size = 0x4, scoped, tag = 'scoped memory for tpu_custom_call.1']
    %8 = vsyncpa [#allocation3], 0
    // Predicated region
    $region2: #{tpu_custom_call.1} parent=1 // pred_check
      _
    $region3: #{tpu_custom_call.1} parent=1 // pred_check_branch
      %10 = sbr.rel (0) target = $region5
    $region4: #{tpu_custom_call.1} parent=1 // pred_region
      _
    $region5: #{tpu_custom_call.1} parent=1 // pred_fallthru
      _
    // Predicated region
    $region6: #{tpu_custom_call.1} parent=1 // pred_check
      _
    $region7: #{tpu_custom_call.1} parent=1 // pred_check_branch
      %12 = sbr.rel (0) target = $region9
    $region8: #{tpu_custom_call.1} parent=1 // pred_region
      _
    $region9: #{tpu_custom_call.1} parent=1 // pred_fallthru
      _
    // Predicated region
    $region10: #{tpu_custom_call.1} parent=1 // pred_check
      _
    $region11: #{tpu_custom_call.1} parent=1 // pred_check_branch
      %14 = sbr.rel (0) target = $region13
    $region12: #{tpu_custom_call.1} parent=1 // pred_region
      _
    $region13: #{tpu_custom_call.1} parent=1 // pred_fallthru
      _
    %v15 = vld [vmem:[%s2] sm:$0xff]
    %v16 = vlaneseq
    %v17 = vshrl.u32 %v16, 7
    %v18 = vsub.s32 0, %v17
    %v19 = vrot.slane %v15, %v18
    %21 = vbcast.lane.b32.xlu0 %v19, 256
    %v22 = vpop.permute.xlu0 %21
    %v23 = vlaneseq
    %v24 = vshrl.u32 %v23, 7
    %v25 = vsub.s32 1, %v24
    %v26 = vrot.slane %v15, %v25
    %28 = vbcast.lane.b32.xlu0 %v26, 256
    %v29 = vpop.permute.xlu0 %28
    %v30 = vlaneseq
    %v31 = vshrl.u32 %v30, 7
    %v32 = vsub.s32 2, %v31
    %v33 = vrot.slane %v15, %v32
    %35 = vbcast.lane.b32.xlu0 %v33, 256
    %v36 = vpop.permute.xlu0 %35
    %v37 = vlaneseq
    %v38 = vshrl.u32 %v37, 7
    %v39 = vsub.s32 3, %v38
    %v40 = vrot.slane %v15, %v39
    %42 = vbcast.lane.b32.xlu0 %v40, 256
    %v43 = vpop.permute.xlu0 %42
    %v44 = vlaneseq
    %v45 = vshrl.u32 %v44, 7
    %v46 = vsub.s32 4, %v45
    %v47 = vrot.slane %v15, %v46
    %49 = vbcast.lane.b32.xlu0 %v47, 256
    %v50 = vpop.permute.xlu0 %49
    %v51 = vlaneseq
    %v52 = vshrl.u32 %v51, 7
    %v53 = vsub.s32 5, %v52
    %v54 = vrot.slane %v15, %v53
    %56 = vbcast.lane.b32.xlu0 %v54, 256
    %v57 = vpop.permute.xlu0 %56
    %v58 = vlaneseq
    %v59 = vshrl.u32 %v58, 7
    %v60 = vsub.s32 6, %v59
    %v61 = vrot.slane %v15, %v60
    %63 = vbcast.lane.b32.xlu0 %v61, 256
    %v64 = vpop.permute.xlu0 %63
    %v65 = vlaneseq
    %v66 = vshrl.u32 %v65, 7
    %v67 = vsub.s32 7, %v66
    %v68 = vrot.slane %v15, %v67
    %70 = vbcast.lane.b32.xlu0 %v68, 256
    %v71 = vpop.permute.xlu0 %70
    %v72 = vlaneseq
    %v73 = vshrl.u32 %v72, 7
    %vm74 = vcmp.eq.s32.totalorder %v73, 6
    %v75 = vsel %vm74, 0.0, -10000.0
    %v76 = vld [vmem:[%s0] sm:$0xff]
    %v77 = vld [vmem:[%s1] sm:$0x1]
    %v78 = vadd.f32 %v22, %v75
    %v79 = vadd.f32 %v29, %v75
    %v80 = vadd.f32 %v36, %v75
    %v81 = vadd.f32 %v43, %v75
    %v82 = vadd.f32 %v50, %v75
    %v83 = vadd.f32 %v57, %v75
    %v84 = vadd.f32 %v64, %v75
    %v85 = vadd.f32 %v71, %v75
    %v87 = vcombine.high %v76, %v76
    %v89 = vunpack.c.l.s4 1966171168
    %v90 = vunpack.c.0.s8 %v89
    %v91 = vlaneseq
    %v92 = vshrl.u32 %v91, 7
    %v93 = vsub.s32 %v90, %v92
    %v94 = vrot.slane %v76, %v93
    %v96 = vunpack.c.l.s4 1966171168
    %v97 = vunpack.c.0.s8 %v96
    %v98 = vlaneseq
    %v99 = vshrl.u32 %v98, 7
    %v100 = vsub.s32 %v97, %v99
    %v101 = vrot.slane %v87, %v100
    %v102 = vcombine.high %v94, %v94
    %v103 = vcombine.high %v101, %v101
    %v105 = vunpack.c.l.s4 1966171168
    %v106 = vunpack.c.0.s8 %v105
    %v107 = vlaneseq
    %v108 = vshrl.u32 %v107, 7
    %v109 = vsub.s32 %v106, %v108
    %v110 = vrot.slane %v94, %v109
    %v112 = vunpack.c.l.s4 1966171168
    %v113 = vunpack.c.0.s8 %v112
    %v114 = vlaneseq
    %v115 = vshrl.u32 %v114, 7
    %v116 = vsub.s32 %v113, %v115
    %v117 = vrot.slane %v101, %v116
    %v119 = vunpack.c.l.s4 1966171168
    %v120 = vunpack.c.0.s8 %v119
    %v121 = vlaneseq
    %v122 = vshrl.u32 %v121, 7
    %v123 = vsub.s32 %v120, %v122
    %v124 = vrot.slane %v102, %v123
    %v126 = vunpack.c.l.s4 1966171168
    %v127 = vunpack.c.0.s8 %v126
    %v128 = vlaneseq
    %v129 = vshrl.u32 %v128, 7
    %v130 = vsub.s32 %v127, %v129
    %v131 = vrot.slane %v103, %v130
    %v132 = vcombine.high %v110, %v110
    %v133 = vcombine.high %v117, %v117
    %v134 = vcombine.high %v124, %v124
    %v135 = vcombine.high %v131, %v131
    %v136 = vlaneseq
    %v137 = vshrl.u32 %v136, 7
    %v138 = vsub.s32 0, %v137
    %v139 = vrot.slane %v110, %v138
    %v140 = vlaneseq
    %v141 = vshrl.u32 %v140, 7
    %v142 = vsub.s32 0, %v141
    %v143 = vrot.slane %v124, %v142
    %v144 = vlaneseq
    %v145 = vshrl.u32 %v144, 7
    %v146 = vsub.s32 0, %v145
    %v147 = vrot.slane %v132, %v146
    %v148 = vlaneseq
    %v149 = vshrl.u32 %v148, 7
    %v150 = vsub.s32 0, %v149
    %v151 = vrot.slane %v134, %v150
    %v152 = vlaneseq
    %v153 = vshrl.u32 %v152, 7
    %v154 = vsub.s32 0, %v153
    %v155 = vrot.slane %v117, %v154
    %v156 = vlaneseq
    %v157 = vshrl.u32 %v156, 7
    %v158 = vsub.s32 0, %v157
    %v159 = vrot.slane %v131, %v158
    %v160 = vlaneseq
    %v161 = vshrl.u32 %v160, 7
    %v162 = vsub.s32 0, %v161
    %v163 = vrot.slane %v133, %v162
    %v164 = vlaneseq
    %v165 = vshrl.u32 %v164, 7
    %v166 = vsub.s32 0, %v165
    %v167 = vrot.slane %v135, %v166
    %v176 = vadd.f32 %v78, %v139
    %v177 = vadd.f32 %v79, %v143
    %v178 = vadd.f32 %v80, %v147
    %v179 = vadd.f32 %v81, %v151
    %v180 = vadd.f32 %v82, %v155
    %v181 = vadd.f32 %v83, %v159
    %v182 = vadd.f32 %v84, %v163
    %v183 = vadd.f32 %v85, %v167
    %vm184 = vcmask 31744
    %v185 = vsel %vm184, %v176, -inf
    %v186 = vrot.slane %v185, 4
    %v187 = vmax.f32 %v185, %v186
    %v188 = vrot.slane %v187, 2
    %v189 = vmax.f32 %v187, %v188
    %v190 = vrot.slane %v189, 1
    %v191 = vmax.f32 %v189, %v190
    %v192 = vsel %vm184, %v177, -inf
    %v193 = vrot.slane %v192, 4
    %v194 = vmax.f32 %v192, %v193
    %v195 = vrot.slane %v194, 2
    %v196 = vmax.f32 %v194, %v195
    %v197 = vrot.slane %v196, 1
    %v198 = vmax.f32 %v196, %v197
    %v199 = vsel %vm184, %v178, -inf
    %v200 = vrot.slane %v199, 4
    %v201 = vmax.f32 %v199, %v200
    %v202 = vrot.slane %v201, 2
    %v203 = vmax.f32 %v201, %v202
    %v204 = vrot.slane %v203, 1
    %v205 = vmax.f32 %v203, %v204
    %v206 = vsel %vm184, %v179, -inf
    %v207 = vrot.slane %v206, 4
    %v208 = vmax.f32 %v206, %v207
    %v209 = vrot.slane %v208, 2
    %v210 = vmax.f32 %v208, %v209
    %v211 = vrot.slane %v210, 1
    %v212 = vmax.f32 %v210, %v211
    %v213 = vsel %vm184, %v180, -inf
    %v214 = vrot.slane %v213, 4
    %v215 = vmax.f32 %v213, %v214
    %v216 = vrot.slane %v215, 2
    %v217 = vmax.f32 %v215, %v216
    %v218 = vrot.slane %v217, 1
    %v219 = vmax.f32 %v217, %v218
    %v220 = vsel %vm184, %v181, -inf
    %v221 = vrot.slane %v220, 4
    %v222 = vmax.f32 %v220, %v221
    %v223 = vrot.slane %v222, 2
    %v224 = vmax.f32 %v222, %v223
    %v225 = vrot.slane %v224, 1
    %v226 = vmax.f32 %v224, %v225
    %v227 = vsel %vm184, %v182, -inf
    %v228 = vrot.slane %v227, 4
    %v229 = vmax.f32 %v227, %v228
    %v230 = vrot.slane %v229, 2
    %v231 = vmax.f32 %v229, %v230
    %v232 = vrot.slane %v231, 1
    %v233 = vmax.f32 %v231, %v232
    %v234 = vsel %vm184, %v183, -inf
    %v235 = vrot.slane %v234, 4
    %v236 = vmax.f32 %v234, %v235
    %v237 = vrot.slane %v236, 2
    %v238 = vmax.f32 %v236, %v237
    %v239 = vrot.slane %v238, 1
    %v240 = vmax.f32 %v238, %v239
    %v241 = vsub.f32 %v176, %v191
    %v242 = vsub.f32 %v177, %v198
    %v243 = vsub.f32 %v178, %v205
    %v244 = vsub.f32 %v179, %v212
    %v245 = vsub.f32 %v180, %v219
    %v246 = vsub.f32 %v181, %v226
    %v247 = vsub.f32 %v182, %v233
    %v248 = vsub.f32 %v183, %v240
    %v249 = vmul.f32 %v241, 1.442695
    %v250 = vpow.pop %v249
    %v251 = vmul.f32 %v242, 1.442695
    %v252 = vpow.pop %v251
    %v253 = vmul.f32 %v243, 1.442695
    %v254 = vpow.pop %v253
    %v255 = vmul.f32 %v244, 1.442695
    %v256 = vpow.pop %v255
    %v257 = vmul.f32 %v245, 1.442695
    %v258 = vpow.pop %v257
    %v259 = vmul.f32 %v246, 1.442695
    %v260 = vpow.pop %v259
    %v261 = vmul.f32 %v247, 1.442695
    %v262 = vpow.pop %v261
    %v263 = vmul.f32 %v248, 1.442695
    %v264 = vpow.pop %v263
    %v265 = vsel %vm184, %v250, 0.0
    %v266 = vrot.slane %v265, 4
    %v267 = vadd.f32 %v265, %v266
    %v268 = vrot.slane %v267, 2
    %v269 = vadd.f32 %v267, %v268
    %v270 = vrot.slane %v269, 1
    %v271 = vadd.f32 %v269, %v270
    %v272 = vsel %vm184, %v252, 0.0
    %v273 = vrot.slane %v272, 4
    %v274 = vadd.f32 %v272, %v273
    %v275 = vrot.slane %v274, 2
    %v276 = vadd.f32 %v274, %v275
    %v277 = vrot.slane %v276, 1
    %v278 = vadd.f32 %v276, %v277
    %v279 = vsel %vm184, %v254, 0.0
    %v280 = vrot.slane %v279, 4
    %v281 = vadd.f32 %v279, %v280
    %v282 = vrot.slane %v281, 2
    %v283 = vadd.f32 %v281, %v282
    %v284 = vrot.slane %v283, 1
    %v285 = vadd.f32 %v283, %v284
    %v286 = vsel %vm184, %v256, 0.0
    %v287 = vrot.slane %v286, 4
    %v288 = vadd.f32 %v286, %v287
    %v289 = vrot.slane %v288, 2
    %v290 = vadd.f32 %v288, %v289
    %v291 = vrot.slane %v290, 1
    %v292 = vadd.f32 %v290, %v291
    %v293 = vsel %vm184, %v258, 0.0
    %v294 = vrot.slane %v293, 4
    %v295 = vadd.f32 %v293, %v294
    %v296 = vrot.slane %v295, 2
    %v297 = vadd.f32 %v295, %v296
    %v298 = vrot.slane %v297, 1
    %v299 = vadd.f32 %v297, %v298
    %v300 = vsel %vm184, %v260, 0.0
    %v301 = vrot.slane %v300, 4
    %v302 = vadd.f32 %v300, %v301
    %v303 = vrot.slane %v302, 2
    %v304 = vadd.f32 %v302, %v303
    %v305 = vrot.slane %v304, 1
    %v306 = vadd.f32 %v304, %v305
    %v307 = vsel %vm184, %v262, 0.0
    %v308 = vrot.slane %v307, 4
    %v309 = vadd.f32 %v307, %v308
    %v310 = vrot.slane %v309, 2
    %v311 = vadd.f32 %v309, %v310
    %v312 = vrot.slane %v311, 1
    %v313 = vadd.f32 %v311, %v312
    %v314 = vsel %vm184, %v264, 0.0
    %v315 = vrot.slane %v314, 4
    %v316 = vadd.f32 %v314, %v315
    %v317 = vrot.slane %v316, 2
    %v318 = vadd.f32 %v316, %v317
    %v319 = vrot.slane %v318, 1
    %v320 = vadd.f32 %v318, %v319
    %v321 = vlog2.pop %v271
    %v322 = vmul.f32 %v321, 0.6931472
    %v323 = vlog2.pop %v278
    %v324 = vmul.f32 %v323, 0.6931472
    %v325 = vlog2.pop %v285
    %v326 = vmul.f32 %v325, 0.6931472
    %v327 = vlog2.pop %v292
    %v328 = vmul.f32 %v327, 0.6931472
    %v329 = vlog2.pop %v299
    %v330 = vmul.f32 %v329, 0.6931472
    %v331 = vlog2.pop %v306
    %v332 = vmul.f32 %v331, 0.6931472
    %v333 = vlog2.pop %v313
    %v334 = vmul.f32 %v333, 0.6931472
    %v335 = vlog2.pop %v320
    %v336 = vmul.f32 %v335, 0.6931472
    %v337 = vadd.f32 %v191, %v322
    %v338 = vadd.f32 %v198, %v324
    %v339 = vadd.f32 %v205, %v326
    %v340 = vadd.f32 %v212, %v328
    %v341 = vadd.f32 %v219, %v330
    %v342 = vadd.f32 %v226, %v332
    %v343 = vadd.f32 %v233, %v334
    %v344 = vadd.f32 %v240, %v336
    %vm345 = vcmp.gt.f32.partialorder %v77, 0.0
    %v346 = vsel %vm345, 1, 0
    %v347 = vlaneseq
    %v348 = vshrl.u32 %v347, 7
    %v349 = vsub.s32 0, %v348
    %v350 = vrot.slane %v346, %v349
    %vm351 = vcmp.eq.s32.totalorder %v350, 1
    %vm360 = vcmask 1041409
    %v361 = vsel %vm360, %v338, %v337
    %vm362 = vcmask 1042434
    %v363 = vsel %vm362, %v339, %v361
    %vm364 = vcmask 1043459
    %v365 = vsel %vm364, %v340, %v363
    %vm366 = vcmask 1044484
    %v367 = vsel %vm366, %v341, %v365
    %vm368 = vcmask 1045509
    %v369 = vsel %vm368, %v342, %v367
    %vm370 = vcmask 1046534
    %v371 = vsel %vm370, %v343, %v369
    %vm372 = vcmask 1047559
    %v373 = vsel %vm372, %v344, %v371
    %v375 = vsel %vm351, %v373, %v75
    %s376 = scalar_lea.vmem %s0, 8
    %v377 = vld [vmem:[%s376] sm:$0xff]
    %v378 = vld [vmem:[%s1 + $0x1] sm:$0x1]
    %v379 = vadd.f32 %v22, %v375
    %v380 = vadd.f32 %v29, %v375
    %v381 = vadd.f32 %v36, %v375
    %v382 = vadd.f32 %v43, %v375
    %v383 = vadd.f32 %v50, %v375
    %v384 = vadd.f32 %v57, %v375
    %v385 = vadd.f32 %v64, %v375
    %v386 = vadd.f32 %v71, %v375
    %v388 = vcombine.high %v377, %v377
    %v390 = vunpack.c.l.s4 1966171168
    %v391 = vunpack.c.0.s8 %v390
    %v392 = vlaneseq
    %v393 = vshrl.u32 %v392, 7
    %v394 = vsub.s32 %v391, %v393
    %v395 = vrot.slane %v377, %v394
    %v397 = vunpack.c.l.s4 1966171168
    %v398 = vunpack.c.0.s8 %v397
    %v399 = vlaneseq
    %v400 = vshrl.u32 %v399, 7
    %v401 = vsub.s32 %v398, %v400
    %v402 = vrot.slane %v388, %v401
    %v403 = vcombine.high %v395, %v395
    %v404 = vcombine.high %v402, %v402
    %v406 = vunpack.c.l.s4 1966171168
    %v407 = vunpack.c.0.s8 %v406
    %v408 = vlaneseq
    %v409 = vshrl.u32 %v408, 7
    %v410 = vsub.s32 %v407, %v409
    %v411 = vrot.slane %v395, %v410
    %v413 = vunpack.c.l.s4 1966171168
    %v414 = vunpack.c.0.s8 %v413
    %v415 = vlaneseq
    %v416 = vshrl.u32 %v415, 7
    %v417 = vsub.s32 %v414, %v416
    %v418 = vrot.slane %v402, %v417
    %v420 = vunpack.c.l.s4 1966171168
    %v421 = vunpack.c.0.s8 %v420
    %v422 = vlaneseq
    %v423 = vshrl.u32 %v422, 7
    %v424 = vsub.s32 %v421, %v423
    %v425 = vrot.slane %v403, %v424
    %v427 = vunpack.c.l.s4 1966171168
    %v428 = vunpack.c.0.s8 %v427
    %v429 = vlaneseq
    %v430 = vshrl.u32 %v429, 7
    %v431 = vsub.s32 %v428, %v430
    %v432 = vrot.slane %v404, %v431
    %v433 = vcombine.high %v411, %v411
    %v434 = vcombine.high %v418, %v418
    %v435 = vcombine.high %v425, %v425
    %v436 = vcombine.high %v432, %v432
    %v437 = vlaneseq
    %v438 = vshrl.u32 %v437, 7
    %v439 = vsub.s32 0, %v438
    %v440 = vrot.slane %v411, %v439
    %v441 = vlaneseq
    %v442 = vshrl.u32 %v441, 7
    %v443 = vsub.s32 0, %v442
    %v444 = vrot.slane %v425, %v443
    %v445 = vlaneseq
    %v446 = vshrl.u32 %v445, 7
    %v447 = vsub.s32 0, %v446
    %v448 = vrot.slane %v433, %v447
    %v449 = vlaneseq
    %v450 = vshrl.u32 %v449, 7
    %v451 = vsub.s32 0, %v450
    %v452 = vrot.slane %v435, %v451
    %v453 = vlaneseq
    %v454 = vshrl.u32 %v453, 7
    %v455 = vsub.s32 0, %v454
    %v456 = vrot.slane %v418, %v455
    %v457 = vlaneseq
    %v458 = vshrl.u32 %v457, 7
    %v459 = vsub.s32 0, %v458
    %v460 = vrot.slane %v432, %v459
    %v461 = vlaneseq
    %v462 = vshrl.u32 %v461, 7
    %v463 = vsub.s32 0, %v462
    %v464 = vrot.slane %v434, %v463
    %v465 = vlaneseq
    %v466 = vshrl.u32 %v465, 7
    %v467 = vsub.s32 0, %v466
    %v468 = vrot.slane %v436, %v467
    %v477 = vadd.f32 %v379, %v440
    %v478 = vadd.f32 %v380, %v444
    %v479 = vadd.f32 %v381, %v448
    %v480 = vadd.f32 %v382, %v452
    %v481 = vadd.f32 %v383, %v456
    %v482 = vadd.f32 %v384, %v460
    %v483 = vadd.f32 %v385, %v464
    %v484 = vadd.f32 %v386, %v468
    %v485 = vsel %vm184, %v477, -inf
    %v486 = vrot.slane %v485, 4
    %v487 = vmax.f32 %v485, %v486
    %v488 = vrot.slane %v487, 2
    %v489 = vmax.f32 %v487, %v488
    %v490 = vrot.slane %v489, 1
    %v491 = vmax.f32 %v489, %v490
    %v492 = vsel %vm184, %v478, -inf
    %v493 = vrot.slane %v492, 4
    %v494 = vmax.f32 %v492, %v493
    %v495 = vrot.slane %v494, 2
    %v496 = vmax.f32 %v494, %v495
    %v497 = vrot.slane %v496, 1
    %v498 = vmax.f32 %v496, %v497
    %v499 = vsel %vm184, %v479, -inf
    %v500 = vrot.slane %v499, 4
    %v501 = vmax.f32 %v499, %v500
    %v502 = vrot.slane %v501, 2
    %v503 = vmax.f32 %v501, %v502
    %v504 = vrot.slane %v503, 1
    %v505 = vmax.f32 %v503, %v504
    %v506 = vsel %vm184, %v480, -inf
    %v507 = vrot.slane %v506, 4
    %v508 = vmax.f32 %v506, %v507
    %v509 = vrot.slane %v508, 2
    %v510 = vmax.f32 %v508, %v509
    %v511 = vrot.slane %v510, 1
    %v512 = vmax.f32 %v510, %v511
    %v513 = vsel %vm184, %v481, -inf
    %v514 = vrot.slane %v513, 4
    %v515 = vmax.f32 %v513, %v514
    %v516 = vrot.slane %v515, 2
    %v517 = vmax.f32 %v515, %v516
    %v518 = vrot.slane %v517, 1
    %v519 = vmax.f32 %v517, %v518
    %v520 = vsel %vm184, %v482, -inf
    %v521 = vrot.slane %v520, 4
    %v522 = vmax.f32 %v520, %v521
    %v523 = vrot.slane %v522, 2
    %v524 = vmax.f32 %v522, %v523
    %v525 = vrot.slane %v524, 1
    %v526 = vmax.f32 %v524, %v525
    %v527 = vsel %vm184, %v483, -inf
    %v528 = vrot.slane %v527, 4
    %v529 = vmax.f32 %v527, %v528
    %v530 = vrot.slane %v529, 2
    %v531 = vmax.f32 %v529, %v530
    %v532 = vrot.slane %v531, 1
    %v533 = vmax.f32 %v531, %v532
    %v534 = vsel %vm184, %v484, -inf
    %v535 = vrot.slane %v534, 4
    %v536 = vmax.f32 %v534, %v535
    %v537 = vrot.slane %v536, 2
    %v538 = vmax.f32 %v536, %v537
    %v539 = vrot.slane %v538, 1
    %v540 = vmax.f32 %v538, %v539
    %v541 = vsub.f32 %v477, %v491
    %v542 = vsub.f32 %v478, %v498
    %v543 = vsub.f32 %v479, %v505
    %v544 = vsub.f32 %v480, %v512
    %v545 = vsub.f32 %v481, %v519
    %v546 = vsub.f32 %v482, %v526
    %v547 = vsub.f32 %v483, %v533
    %v548 = vsub.f32 %v484, %v540
    %v549 = vmul.f32 %v541, 1.442695
    %v550 = vpow.pop %v549
    %v551 = vmul.f32 %v542, 1.442695
    %v552 = vpow.pop %v551
    %v553 = vmul.f32 %v543, 1.442695
    %v554 = vpow.pop %v553
    %v555 = vmul.f32 %v544, 1.442695
    %v556 = vpow.pop %v555
    %v557 = vmul.f32 %v545, 1.442695
    %v558 = vpow.pop %v557
    %v559 = vmul.f32 %v546, 1.442695
    %v560 = vpow.pop %v559
    %v561 = vmul.f32 %v547, 1.442695
    %v562 = vpow.pop %v561
    %v563 = vmul.f32 %v548, 1.442695
    %v564 = vpow.pop %v563
    %v565 = vsel %vm184, %v550, 0.0
    %v566 = vrot.slane %v565, 4
    %v567 = vadd.f32 %v565, %v566
    %v568 = vrot.slane %v567, 2
    %v569 = vadd.f32 %v567, %v568
    %v570 = vrot.slane %v569, 1
    %v571 = vadd.f32 %v569, %v570
    %v572 = vsel %vm184, %v552, 0.0
    %v573 = vrot.slane %v572, 4
    %v574 = vadd.f32 %v572, %v573
    %v575 = vrot.slane %v574, 2
    %v576 = vadd.f32 %v574, %v575
    %v577 = vrot.slane %v576, 1
    %v578 = vadd.f32 %v576, %v577
    %v579 = vsel %vm184, %v554, 0.0
    %v580 = vrot.slane %v579, 4
    %v581 = vadd.f32 %v579, %v580
    %v582 = vrot.slane %v581, 2
    %v583 = vadd.f32 %v581, %v582
    %v584 = vrot.slane %v583, 1
    %v585 = vadd.f32 %v583, %v584
    %v586 = vsel %vm184, %v556, 0.0
    %v587 = vrot.slane %v586, 4
    %v588 = vadd.f32 %v586, %v587
    %v589 = vrot.slane %v588, 2
    %v590 = vadd.f32 %v588, %v589
    %v591 = vrot.slane %v590, 1
    %v592 = vadd.f32 %v590, %v591
    %v593 = vsel %vm184, %v558, 0.0
    %v594 = vrot.slane %v593, 4
    %v595 = vadd.f32 %v593, %v594
    %v596 = vrot.slane %v595, 2
    %v597 = vadd.f32 %v595, %v596
    %v598 = vrot.slane %v597, 1
    %v599 = vadd.f32 %v597, %v598
    %v600 = vsel %vm184, %v560, 0.0
    %v601 = vrot.slane %v600, 4
    %v602 = vadd.f32 %v600, %v601
    %v603 = vrot.slane %v602, 2
    %v604 = vadd.f32 %v602, %v603
    %v605 = vrot.slane %v604, 1
    %v606 = vadd.f32 %v604, %v605
    %v607 = vsel %vm184, %v562, 0.0
    %v608 = vrot.slane %v607, 4
    %v609 = vadd.f32 %v607, %v608
    %v610 = vrot.slane %v609, 2
    %v611 = vadd.f32 %v609, %v610
    %v612 = vrot.slane %v611, 1
    %v613 = vadd.f32 %v611, %v612
    %v614 = vsel %vm184, %v564, 0.0
    %v615 = vrot.slane %v614, 4
    %v616 = vadd.f32 %v614, %v615
    %v617 = vrot.slane %v616, 2
    %v618 = vadd.f32 %v616, %v617
    %v619 = vrot.slane %v618, 1
    %v620 = vadd.f32 %v618, %v619
    %v621 = vlog2.pop %v571
    %v622 = vmul.f32 %v621, 0.6931472
    %v623 = vlog2.pop %v578
    %v624 = vmul.f32 %v623, 0.6931472
    %v625 = vlog2.pop %v585
    %v626 = vmul.f32 %v625, 0.6931472
    %v627 = vlog2.pop %v592
    %v628 = vmul.f32 %v627, 0.6931472
    %v629 = vlog2.pop %v599
    %v630 = vmul.f32 %v629, 0.6931472
    %v631 = vlog2.pop %v606
    %v632 = vmul.f32 %v631, 0.6931472
    %v633 = vlog2.pop %v613
    %v634 = vmul.f32 %v633, 0.6931472
    %v635 = vlog2.pop %v620
    %v636 = vmul.f32 %v635, 0.6931472
    %v637 = vadd.f32 %v491, %v622
    %v638 = vadd.f32 %v498, %v624
    %v639 = vadd.f32 %v505, %v626
    %v640 = vadd.f32 %v512, %v628
    %v641 = vadd.f32 %v519, %v630
    %v642 = vadd.f32 %v526, %v632
    %v643 = vadd.f32 %v533, %v634
    %v644 = vadd.f32 %v540, %v636
    %vm645 = vcmp.gt.f32.partialorder %v378, 0.0
    %v646 = vsel %vm645, 1, 0
    %v647 = vlaneseq
    %v648 = vshrl.u32 %v647, 7
    %v649 = vsub.s32 0, %v648
    %v650 = vrot.slane %v646, %v649
    %vm651 = vcmp.eq.s32.totalorder %v650, 1
    %v660 = vsel %vm360, %v638, %v637
    %v661 = vsel %vm362, %v639, %v660
    %v662 = vsel %vm364, %v640, %v661
    %v663 = vsel %vm366, %v641, %v662
    %v664 = vsel %vm368, %v642, %v663
    %v665 = vsel %vm370, %v643, %v664
    %v666 = vsel %vm372, %v644, %v665
    %v668 = vsel %vm651, %v666, %v375
    %s669 = scalar_lea.vmem %s0, 16
    %v670 = vld [vmem:[%s669] sm:$0xff]
    %v671 = vld [vmem:[%s1 + $0x2] sm:$0x1]
    %v672 = vadd.f32 %v22, %v668
    %v673 = vadd.f32 %v29, %v668
    %v674 = vadd.f32 %v36, %v668
    %v675 = vadd.f32 %v43, %v668
    %v676 = vadd.f32 %v50, %v668
    %v677 = vadd.f32 %v57, %v668
    %v678 = vadd.f32 %v64, %v668
    %v679 = vadd.f32 %v71, %v668
    %v681 = vcombine.high %v670, %v670
    %v683 = vunpack.c.l.s4 1966171168
    %v684 = vunpack.c.0.s8 %v683
    %v685 = vlaneseq
    %v686 = vshrl.u32 %v685, 7
    %v687 = vsub.s32 %v684, %v686
    %v688 = vrot.slane %v670, %v687
    %v690 = vunpack.c.l.s4 1966171168
    %v691 = vunpack.c.0.s8 %v690
    %v692 = vlaneseq
    %v693 = vshrl.u32 %v692, 7
    %v694 = vsub.s32 %v691, %v693
    %v695 = vrot.slane %v681, %v694
    %v696 = vcombine.high %v688, %v688
    %v697 = vcombine.high %v695, %v695
    %v699 = vunpack.c.l.s4 1966171168
    %v700 = vunpack.c.0.s8 %v699
    %v701 = vlaneseq
    %v702 = vshrl.u32 %v701, 7
    %v703 = vsub.s32 %v700, %v702
    %v704 = vrot.slane %v688, %v703
    %v706 = vunpack.c.l.s4 1966171168
    %v707 = vunpack.c.0.s8 %v706
    %v708 = vlaneseq
    %v709 = vshrl.u32 %v708, 7
    %v710 = vsub.s32 %v707, %v709
    %v711 = vrot.slane %v695, %v710
    %v713 = vunpack.c.l.s4 1966171168
    %v714 = vunpack.c.0.s8 %v713
    %v715 = vlaneseq
    %v716 = vshrl.u32 %v715, 7
    %v717 = vsub.s32 %v714, %v716
    %v718 = vrot.slane %v696, %v717
    %v720 = vunpack.c.l.s4 1966171168
    %v721 = vunpack.c.0.s8 %v720
    %v722 = vlaneseq
    %v723 = vshrl.u32 %v722, 7
    %v724 = vsub.s32 %v721, %v723
    %v725 = vrot.slane %v697, %v724
    %v726 = vcombine.high %v704, %v704
    %v727 = vcombine.high %v711, %v711
    %v728 = vcombine.high %v718, %v718
    %v729 = vcombine.high %v725, %v725
    %v730 = vlaneseq
    %v731 = vshrl.u32 %v730, 7
    %v732 = vsub.s32 0, %v731
    %v733 = vrot.slane %v704, %v732
    %v734 = vlaneseq
    %v735 = vshrl.u32 %v734, 7
    %v736 = vsub.s32 0, %v735
    %v737 = vrot.slane %v718, %v736
    %v738 = vlaneseq
    %v739 = vshrl.u32 %v738, 7
    %v740 = vsub.s32 0, %v739
    %v741 = vrot.slane %v726, %v740
    %v742 = vlaneseq
    %v743 = vshrl.u32 %v742, 7
    %v744 = vsub.s32 0, %v743
    %v745 = vrot.slane %v728, %v744
    %v746 = vlaneseq
    %v747 = vshrl.u32 %v746, 7
    %v748 = vsub.s32 0, %v747
    %v749 = vrot.slane %v711, %v748
    %v750 = vlaneseq
    %v751 = vshrl.u32 %v750, 7
    %v752 = vsub.s32 0, %v751
    %v753 = vrot.slane %v725, %v752
    %v754 = vlaneseq
    %v755 = vshrl.u32 %v754, 7
    %v756 = vsub.s32 0, %v755
    %v757 = vrot.slane %v727, %v756
    %v758 = vlaneseq
    %v759 = vshrl.u32 %v758, 7
    %v760 = vsub.s32 0, %v759
    %v761 = vrot.slane %v729, %v760
    %v770 = vadd.f32 %v672, %v733
    %v771 = vadd.f32 %v673, %v737
    %v772 = vadd.f32 %v674, %v741
    %v773 = vadd.f32 %v675, %v745
    %v774 = vadd.f32 %v676, %v749
    %v775 = vadd.f32 %v677, %v753
    %v776 = vadd.f32 %v678, %v757
    %v777 = vadd.f32 %v679, %v761
    %v778 = vsel %vm184, %v770, -inf
    %v779 = vrot.slane %v778, 4
    %v780 = vmax.f32 %v778, %v779
    %v781 = vrot.slane %v780, 2
    %v782 = vmax.f32 %v780, %v781
    %v783 = vrot.slane %v782, 1
    %v784 = vmax.f32 %v782, %v783
    %v785 = vsel %vm184, %v771, -inf
    %v786 = vrot.slane %v785, 4
    %v787 = vmax.f32 %v785, %v786
    %v788 = vrot.slane %v787, 2
    %v789 = vmax.f32 %v787, %v788
    %v790 = vrot.slane %v789, 1
    %v791 = vmax.f32 %v789, %v790
    %v792 = vsel %vm184, %v772, -inf
    %v793 = vrot.slane %v792, 4
    %v794 = vmax.f32 %v792, %v793
    %v795 = vrot.slane %v794, 2
    %v796 = vmax.f32 %v794, %v795
    %v797 = vrot.slane %v796, 1
    %v798 = vmax.f32 %v796, %v797
    %v799 = vsel %vm184, %v773, -inf
    %v800 = vrot.slane %v799, 4
    %v801 = vmax.f32 %v799, %v800
    %v802 = vrot.slane %v801, 2
    %v803 = vmax.f32 %v801, %v802
    %v804 = vrot.slane %v803, 1
    %v805 = vmax.f32 %v803, %v804
    %v806 = vsel %vm184, %v774, -inf
    %v807 = vrot.slane %v806, 4
    %v808 = vmax.f32 %v806, %v807
    %v809 = vrot.slane %v808, 2
    %v810 = vmax.f32 %v808, %v809
    %v811 = vrot.slane %v810, 1
    %v812 = vmax.f32 %v810, %v811
    %v813 = vsel %vm184, %v775, -inf
    %v814 = vrot.slane %v813, 4
    %v815 = vmax.f32 %v813, %v814
    %v816 = vrot.slane %v815, 2
    %v817 = vmax.f32 %v815, %v816
    %v818 = vrot.slane %v817, 1
    %v819 = vmax.f32 %v817, %v818
    %v820 = vsel %vm184, %v776, -inf
    %v821 = vrot.slane %v820, 4
    %v822 = vmax.f32 %v820, %v821
    %v823 = vrot.slane %v822, 2
    %v824 = vmax.f32 %v822, %v823
    %v825 = vrot.slane %v824, 1
    %v826 = vmax.f32 %v824, %v825
    %v827 = vsel %vm184, %v777, -inf
    %v828 = vrot.slane %v827, 4
    %v829 = vmax.f32 %v827, %v828
    %v830 = vrot.slane %v829, 2
    %v831 = vmax.f32 %v829, %v830
    %v832 = vrot.slane %v831, 1
    %v833 = vmax.f32 %v831, %v832
    %v834 = vsub.f32 %v770, %v784
    %v835 = vsub.f32 %v771, %v791
    %v836 = vsub.f32 %v772, %v798
    %v837 = vsub.f32 %v773, %v805
    %v838 = vsub.f32 %v774, %v812
    %v839 = vsub.f32 %v775, %v819
    %v840 = vsub.f32 %v776, %v826
    %v841 = vsub.f32 %v777, %v833
    %v842 = vmul.f32 %v834, 1.442695
    %v843 = vpow.pop %v842
    %v844 = vmul.f32 %v835, 1.442695
    %v845 = vpow.pop %v844
    %v846 = vmul.f32 %v836, 1.442695
    %v847 = vpow.pop %v846
    %v848 = vmul.f32 %v837, 1.442695
    %v849 = vpow.pop %v848
    %v850 = vmul.f32 %v838, 1.442695
    %v851 = vpow.pop %v850
    %v852 = vmul.f32 %v839, 1.442695
    %v853 = vpow.pop %v852
    %v854 = vmul.f32 %v840, 1.442695
    %v855 = vpow.pop %v854
    %v856 = vmul.f32 %v841, 1.442695
    %v857 = vpow.pop %v856
    %v858 = vsel %vm184, %v843, 0.0
    %v859 = vrot.slane %v858, 4
    %v860 = vadd.f32 %v858, %v859
    %v861 = vrot.slane %v860, 2
    %v862 = vadd.f32 %v860, %v861
    %v863 = vrot.slane %v862, 1
    %v864 = vadd.f32 %v862, %v863
    %v865 = vsel %vm184, %v845, 0.0
    %v866 = vrot.slane %v865, 4
    %v867 = vadd.f32 %v865, %v866
    %v868 = vrot.slane %v867, 2
    %v869 = vadd.f32 %v867, %v868
    %v870 = vrot.slane %v869, 1
    %v871 = vadd.f32 %v869, %v870
    %v872 = vsel %vm184, %v847, 0.0
    %v873 = vrot.slane %v872, 4
    %v874 = vadd.f32 %v872, %v873
    %v875 = vrot.slane %v874, 2
    %v876 = vadd.f32 %v874, %v875
    %v877 = vrot.slane %v876, 1
    %v878 = vadd.f32 %v876, %v877
    %v879 = vsel %vm184, %v849, 0.0
    %v880 = vrot.slane %v879, 4
    %v881 = vadd.f32 %v879, %v880
    %v882 = vrot.slane %v881, 2
    %v883 = vadd.f32 %v881, %v882
    %v884 = vrot.slane %v883, 1
    %v885 = vadd.f32 %v883, %v884
    %v886 = vsel %vm184, %v851, 0.0
    %v887 = vrot.slane %v886, 4
    %v888 = vadd.f32 %v886, %v887
    %v889 = vrot.slane %v888, 2
    %v890 = vadd.f32 %v888, %v889
    %v891 = vrot.slane %v890, 1
    %v892 = vadd.f32 %v890, %v891
    %v893 = vsel %vm184, %v853, 0.0
    %v894 = vrot.slane %v893, 4
    %v895 = vadd.f32 %v893, %v894
    %v896 = vrot.slane %v895, 2
    %v897 = vadd.f32 %v895, %v896
    %v898 = vrot.slane %v897, 1
    %v899 = vadd.f32 %v897, %v898
    %v900 = vsel %vm184, %v855, 0.0
    %v901 = vrot.slane %v900, 4
    %v902 = vadd.f32 %v900, %v901
    %v903 = vrot.slane %v902, 2
    %v904 = vadd.f32 %v902, %v903
    %v905 = vrot.slane %v904, 1
    %v906 = vadd.f32 %v904, %v905
    %v907 = vsel %vm184, %v857, 0.0
    %v908 = vrot.slane %v907, 4
    %v909 = vadd.f32 %v907, %v908
    %v910 = vrot.slane %v909, 2
    %v911 = vadd.f32 %v909, %v910
    %v912 = vrot.slane %v911, 1
    %v913 = vadd.f32 %v911, %v912
    %v914 = vlog2.pop %v864
    %v915 = vmul.f32 %v914, 0.6931472
    %v916 = vlog2.pop %v871
    %v917 = vmul.f32 %v916, 0.6931472
    %v918 = vlog2.pop %v878
    %v919 = vmul.f32 %v918, 0.6931472
    %v920 = vlog2.pop %v885
    %v921 = vmul.f32 %v920, 0.6931472
    %v922 = vlog2.pop %v892
    %v923 = vmul.f32 %v922, 0.6931472
    %v924 = vlog2.pop %v899
    %v925 = vmul.f32 %v924, 0.6931472
    %v926 = vlog2.pop %v906
    %v927 = vmul.f32 %v926, 0.6931472
    %v928 = vlog2.pop %v913
    %v929 = vmul.f32 %v928, 0.6931472
    %v930 = vadd.f32 %v784, %v915
    %v931 = vadd.f32 %v791, %v917
    %v932 = vadd.f32 %v798, %v919
    %v933 = vadd.f32 %v805, %v921
    %v934 = vadd.f32 %v812, %v923
    %v935 = vadd.f32 %v819, %v925
    %v936 = vadd.f32 %v826, %v927
    %v937 = vadd.f32 %v833, %v929
    %vm938 = vcmp.gt.f32.partialorder %v671, 0.0
    %v939 = vsel %vm938, 1, 0
    %v940 = vlaneseq
    %v941 = vshrl.u32 %v940, 7
    %v942 = vsub.s32 0, %v941
    %v943 = vrot.slane %v939, %v942
    %vm944 = vcmp.eq.s32.totalorder %v943, 1
    %v953 = vsel %vm360, %v931, %v930
    %v954 = vsel %vm362, %v932, %v953
    %v955 = vsel %vm364, %v933, %v954
    %v956 = vsel %vm366, %v934, %v955
    %v957 = vsel %vm368, %v935, %v956
    %v958 = vsel %vm370, %v936, %v957
    %v959 = vsel %vm372, %v937, %v958
    %v961 = vsel %vm944, %v959, %v668
    %s962 = scalar_lea.vmem %s0, 24
    %v963 = vld [vmem:[%s962] sm:$0xff]
    %v964 = vld [vmem:[%s1 + $0x3] sm:$0x1]
    %v965 = vadd.f32 %v22, %v961
    %v966 = vadd.f32 %v29, %v961
    %v967 = vadd.f32 %v36, %v961
    %v968 = vadd.f32 %v43, %v961
    %v969 = vadd.f32 %v50, %v961
    %v970 = vadd.f32 %v57, %v961
    %v971 = vadd.f32 %v64, %v961
    %v972 = vadd.f32 %v71, %v961
    %v974 = vcombine.high %v963, %v963
    %v976 = vunpack.c.l.s4 1966171168
    %v977 = vunpack.c.0.s8 %v976
    %v978 = vlaneseq
    %v979 = vshrl.u32 %v978, 7
    %v980 = vsub.s32 %v977, %v979
    %v981 = vrot.slane %v963, %v980
    %v983 = vunpack.c.l.s4 1966171168
    %v984 = vunpack.c.0.s8 %v983
    %v985 = vlaneseq
    %v986 = vshrl.u32 %v985, 7
    %v987 = vsub.s32 %v984, %v986
    %v988 = vrot.slane %v974, %v987
    %v989 = vcombine.high %v981, %v981
    %v990 = vcombine.high %v988, %v988
    %v992 = vunpack.c.l.s4 1966171168
    %v993 = vunpack.c.0.s8 %v992
    %v994 = vlaneseq
    %v995 = vshrl.u32 %v994, 7
    %v996 = vsub.s32 %v993, %v995
    %v997 = vrot.slane %v981, %v996
    %v999 = vunpack.c.l.s4 1966171168
    %v1000 = vunpack.c.0.s8 %v999
    %v1001 = vlaneseq
    %v1002 = vshrl.u32 %v1001, 7
    %v1003 = vsub.s32 %v1000, %v1002
    %v1004 = vrot.slane %v988, %v1003
    %v1006 = vunpack.c.l.s4 1966171168
    %v1007 = vunpack.c.0.s8 %v1006
    %v1008 = vlaneseq
    %v1009 = vshrl.u32 %v1008, 7
    %v1010 = vsub.s32 %v1007, %v1009
    %v1011 = vrot.slane %v989, %v1010
    %v1013 = vunpack.c.l.s4 1966171168
    %v1014 = vunpack.c.0.s8 %v1013
    %v1015 = vlaneseq
    %v1016 = vshrl.u32 %v1015, 7
    %v1017 = vsub.s32 %v1014, %v1016
    %v1018 = vrot.slane %v990, %v1017
    %v1019 = vcombine.high %v997, %v997
    %v1020 = vcombine.high %v1004, %v1004
    %v1021 = vcombine.high %v1011, %v1011
    %v1022 = vcombine.high %v1018, %v1018
    %v1023 = vlaneseq
    %v1024 = vshrl.u32 %v1023, 7
    %v1025 = vsub.s32 0, %v1024
    %v1026 = vrot.slane %v997, %v1025
    %v1027 = vlaneseq
    %v1028 = vshrl.u32 %v1027, 7
    %v1029 = vsub.s32 0, %v1028
    %v1030 = vrot.slane %v1011, %v1029
    %v1031 = vlaneseq
    %v1032 = vshrl.u32 %v1031, 7
    %v1033 = vsub.s32 0, %v1032
    %v1034 = vrot.slane %v1019, %v1033
    %v1035 = vlaneseq
    %v1036 = vshrl.u32 %v1035, 7
    %v1037 = vsub.s32 0, %v1036
    %v1038 = vrot.slane %v1021, %v1037
    %v1039 = vlaneseq
    %v1040 = vshrl.u32 %v1039, 7
    %v1041 = vsub.s32 0, %v1040
    %v1042 = vrot.slane %v1004, %v1041
    %v1043 = vlaneseq
    %v1044 = vshrl.u32 %v1043, 7
    %v1045 = vsub.s32 0, %v1044
    %v1046 = vrot.slane %v1018, %v1045
    %v1047 = vlaneseq
    %v1048 = vshrl.u32 %v1047, 7
    %v1049 = vsub.s32 0, %v1048
    %v1050 = vrot.slane %v1020, %v1049
    %v1051 = vlaneseq
    %v1052 = vshrl.u32 %v1051, 7
    %v1053 = vsub.s32 0, %v1052
    %v1054 = vrot.slane %v1022, %v1053
    %v1063 = vadd.f32 %v965, %v1026
    %v1064 = vadd.f32 %v966, %v1030
    %v1065 = vadd.f32 %v967, %v1034
    %v1066 = vadd.f32 %v968, %v1038
    %v1067 = vadd.f32 %v969, %v1042
    %v1068 = vadd.f32 %v970, %v1046
    %v1069 = vadd.f32 %v971, %v1050
    %v1070 = vadd.f32 %v972, %v1054
    %v1071 = vsel %vm184, %v1063, -inf
    %v1072 = vrot.slane %v1071, 4
    %v1073 = vmax.f32 %v1071, %v1072
    %v1074 = vrot.slane %v1073, 2
    %v1075 = vmax.f32 %v1073, %v1074
    %v1076 = vrot.slane %v1075, 1
    %v1077 = vmax.f32 %v1075, %v1076
    %v1078 = vsel %vm184, %v1064, -inf
    %v1079 = vrot.slane %v1078, 4
    %v1080 = vmax.f32 %v1078, %v1079
    %v1081 = vrot.slane %v1080, 2
    %v1082 = vmax.f32 %v1080, %v1081
    %v1083 = vrot.slane %v1082, 1
    %v1084 = vmax.f32 %v1082, %v1083
    %v1085 = vsel %vm184, %v1065, -inf
    %v1086 = vrot.slane %v1085, 4
    %v1087 = vmax.f32 %v1085, %v1086
    %v1088 = vrot.slane %v1087, 2
    %v1089 = vmax.f32 %v1087, %v1088
    %v1090 = vrot.slane %v1089, 1
    %v1091 = vmax.f32 %v1089, %v1090
    %v1092 = vsel %vm184, %v1066, -inf
    %v1093 = vrot.slane %v1092, 4
    %v1094 = vmax.f32 %v1092, %v1093
    %v1095 = vrot.slane %v1094, 2
    %v1096 = vmax.f32 %v1094, %v1095
    %v1097 = vrot.slane %v1096, 1
    %v1098 = vmax.f32 %v1096, %v1097
    %v1099 = vsel %vm184, %v1067, -inf
    %v1100 = vrot.slane %v1099, 4
    %v1101 = vmax.f32 %v1099, %v1100
    %v1102 = vrot.slane %v1101, 2
    %v1103 = vmax.f32 %v1101, %v1102
    %v1104 = vrot.slane %v1103, 1
    %v1105 = vmax.f32 %v1103, %v1104
    %v1106 = vsel %vm184, %v1068, -inf
    %v1107 = vrot.slane %v1106, 4
    %v1108 = vmax.f32 %v1106, %v1107
    %v1109 = vrot.slane %v1108, 2
    %v1110 = vmax.f32 %v1108, %v1109
    %v1111 = vrot.slane %v1110, 1
    %v1112 = vmax.f32 %v1110, %v1111
    %v1113 = vsel %vm184, %v1069, -inf
    %v1114 = vrot.slane %v1113, 4
    %v1115 = vmax.f32 %v1113, %v1114
    %v1116 = vrot.slane %v1115, 2
    %v1117 = vmax.f32 %v1115, %v1116
    %v1118 = vrot.slane %v1117, 1
    %v1119 = vmax.f32 %v1117, %v1118
    %v1120 = vsel %vm184, %v1070, -inf
    %v1121 = vrot.slane %v1120, 4
    %v1122 = vmax.f32 %v1120, %v1121
    %v1123 = vrot.slane %v1122, 2
    %v1124 = vmax.f32 %v1122, %v1123
    %v1125 = vrot.slane %v1124, 1
    %v1126 = vmax.f32 %v1124, %v1125
    %v1127 = vsub.f32 %v1063, %v1077
    %v1128 = vsub.f32 %v1064, %v1084
    %v1129 = vsub.f32 %v1065, %v1091
    %v1130 = vsub.f32 %v1066, %v1098
    %v1131 = vsub.f32 %v1067, %v1105
    %v1132 = vsub.f32 %v1068, %v1112
    %v1133 = vsub.f32 %v1069, %v1119
    %v1134 = vsub.f32 %v1070, %v1126
    %v1135 = vmul.f32 %v1127, 1.442695
    %v1136 = vpow.pop %v1135
    %v1137 = vmul.f32 %v1128, 1.442695
    %v1138 = vpow.pop %v1137
    %v1139 = vmul.f32 %v1129, 1.442695
    %v1140 = vpow.pop %v1139
    %v1141 = vmul.f32 %v1130, 1.442695
    %v1142 = vpow.pop %v1141
    %v1143 = vmul.f32 %v1131, 1.442695
    %v1144 = vpow.pop %v1143
    %v1145 = vmul.f32 %v1132, 1.442695
    %v1146 = vpow.pop %v1145
    %v1147 = vmul.f32 %v1133, 1.442695
    %v1148 = vpow.pop %v1147
    %v1149 = vmul.f32 %v1134, 1.442695
    %v1150 = vpow.pop %v1149
    %v1151 = vsel %vm184, %v1136, 0.0
    %v1152 = vrot.slane %v1151, 4
    %v1153 = vadd.f32 %v1151, %v1152
    %v1154 = vrot.slane %v1153, 2
    %v1155 = vadd.f32 %v1153, %v1154
    %v1156 = vrot.slane %v1155, 1
    %v1157 = vadd.f32 %v1155, %v1156
    %v1158 = vsel %vm184, %v1138, 0.0
    %v1159 = vrot.slane %v1158, 4
    %v1160 = vadd.f32 %v1158, %v1159
    %v1161 = vrot.slane %v1160, 2
    %v1162 = vadd.f32 %v1160, %v1161
    %v1163 = vrot.slane %v1162, 1
    %v1164 = vadd.f32 %v1162, %v1163
    %v1165 = vsel %vm184, %v1140, 0.0
    %v1166 = vrot.slane %v1165, 4
    %v1167 = vadd.f32 %v1165, %v1166
    %v1168 = vrot.slane %v1167, 2
    %v1169 = vadd.f32 %v1167, %v1168
    %v1170 = vrot.slane %v1169, 1
    %v1171 = vadd.f32 %v1169, %v1170
    %v1172 = vsel %vm184, %v1142, 0.0
    %v1173 = vrot.slane %v1172, 4
    %v1174 = vadd.f32 %v1172, %v1173
    %v1175 = vrot.slane %v1174, 2
    %v1176 = vadd.f32 %v1174, %v1175
    %v1177 = vrot.slane %v1176, 1
    %v1178 = vadd.f32 %v1176, %v1177
    %v1179 = vsel %vm184, %v1144, 0.0
    %v1180 = vrot.slane %v1179, 4
    %v1181 = vadd.f32 %v1179, %v1180
    %v1182 = vrot.slane %v1181, 2
    %v1183 = vadd.f32 %v1181, %v1182
    %v1184 = vrot.slane %v1183, 1
    %v1185 = vadd.f32 %v1183, %v1184
    %v1186 = vsel %vm184, %v1146, 0.0
    %v1187 = vrot.slane %v1186, 4
    %v1188 = vadd.f32 %v1186, %v1187
    %v1189 = vrot.slane %v1188, 2
    %v1190 = vadd.f32 %v1188, %v1189
    %v1191 = vrot.slane %v1190, 1
    %v1192 = vadd.f32 %v1190, %v1191
    %v1193 = vsel %vm184, %v1148, 0.0
    %v1194 = vrot.slane %v1193, 4
    %v1195 = vadd.f32 %v1193, %v1194
    %v1196 = vrot.slane %v1195, 2
    %v1197 = vadd.f32 %v1195, %v1196
    %v1198 = vrot.slane %v1197, 1
    %v1199 = vadd.f32 %v1197, %v1198
    %v1200 = vsel %vm184, %v1150, 0.0
    %v1201 = vrot.slane %v1200, 4
    %v1202 = vadd.f32 %v1200, %v1201
    %v1203 = vrot.slane %v1202, 2
    %v1204 = vadd.f32 %v1202, %v1203
    %v1205 = vrot.slane %v1204, 1
    %v1206 = vadd.f32 %v1204, %v1205
    %v1207 = vlog2.pop %v1157
    %v1208 = vmul.f32 %v1207, 0.6931472
    %v1209 = vlog2.pop %v1164
    %v1210 = vmul.f32 %v1209, 0.6931472
    %v1211 = vlog2.pop %v1171
    %v1212 = vmul.f32 %v1211, 0.6931472
    %v1213 = vlog2.pop %v1178
    %v1214 = vmul.f32 %v1213, 0.6931472
    %v1215 = vlog2.pop %v1185
    %v1216 = vmul.f32 %v1215, 0.6931472
    %v1217 = vlog2.pop %v1192
    %v1218 = vmul.f32 %v1217, 0.6931472
    %v1219 = vlog2.pop %v1199
    %v1220 = vmul.f32 %v1219, 0.6931472
    %v1221 = vlog2.pop %v1206
    %v1222 = vmul.f32 %v1221, 0.6931472
    %v1223 = vadd.f32 %v1077, %v1208
    %v1224 = vadd.f32 %v1084, %v1210
    %v1225 = vadd.f32 %v1091, %v1212
    %v1226 = vadd.f32 %v1098, %v1214
    %v1227 = vadd.f32 %v1105, %v1216
    %v1228 = vadd.f32 %v1112, %v1218
    %v1229 = vadd.f32 %v1119, %v1220
    %v1230 = vadd.f32 %v1126, %v1222
    %vm1231 = vcmp.gt.f32.partialorder %v964, 0.0
    %v1232 = vsel %vm1231, 1, 0
    %v1233 = vlaneseq
    %v1234 = vshrl.u32 %v1233, 7
    %v1235 = vsub.s32 0, %v1234
    %v1236 = vrot.slane %v1232, %v1235
    %vm1237 = vcmp.eq.s32.totalorder %v1236, 1
    %v1246 = vsel %vm360, %v1224, %v1223
    %v1247 = vsel %vm362, %v1225, %v1246
    %v1248 = vsel %vm364, %v1226, %v1247
    %v1249 = vsel %vm366, %v1227, %v1248
    %v1250 = vsel %vm368, %v1228, %v1249
    %v1251 = vsel %vm370, %v1229, %v1250
    %v1252 = vsel %vm372, %v1230, %v1251
    %v1254 = vsel %vm1237, %v1252, %v961
    %s1255 = scalar_lea.vmem %s0, 32
    %v1256 = vld [vmem:[%s1255] sm:$0xff]
    %v1257 = vld [vmem:[%s1 + $0x4] sm:$0x1]
    %v1258 = vadd.f32 %v22, %v1254
    %v1259 = vadd.f32 %v29, %v1254
    %v1260 = vadd.f32 %v36, %v1254
    %v1261 = vadd.f32 %v43, %v1254
    %v1262 = vadd.f32 %v50, %v1254
    %v1263 = vadd.f32 %v57, %v1254
    %v1264 = vadd.f32 %v64, %v1254
    %v1265 = vadd.f32 %v71, %v1254
    %v1267 = vcombine.high %v1256, %v1256
    %v1269 = vunpack.c.l.s4 1966171168
    %v1270 = vunpack.c.0.s8 %v1269
    %v1271 = vlaneseq
    %v1272 = vshrl.u32 %v1271, 7
    %v1273 = vsub.s32 %v1270, %v1272
    %v1274 = vrot.slane %v1256, %v1273
    %v1276 = vunpack.c.l.s4 1966171168
    %v1277 = vunpack.c.0.s8 %v1276
    %v1278 = vlaneseq
    %v1279 = vshrl.u32 %v1278, 7
    %v1280 = vsub.s32 %v1277, %v1279
    %v1281 = vrot.slane %v1267, %v1280
    %v1282 = vcombine.high %v1274, %v1274
    %v1283 = vcombine.high %v1281, %v1281
    %v1285 = vunpack.c.l.s4 1966171168
    %v1286 = vunpack.c.0.s8 %v1285
    %v1287 = vlaneseq
    %v1288 = vshrl.u32 %v1287, 7
    %v1289 = vsub.s32 %v1286, %v1288
    %v1290 = vrot.slane %v1274, %v1289
    %v1292 = vunpack.c.l.s4 1966171168
    %v1293 = vunpack.c.0.s8 %v1292
    %v1294 = vlaneseq
    %v1295 = vshrl.u32 %v1294, 7
    %v1296 = vsub.s32 %v1293, %v1295
    %v1297 = vrot.slane %v1281, %v1296
    %v1299 = vunpack.c.l.s4 1966171168
    %v1300 = vunpack.c.0.s8 %v1299
    %v1301 = vlaneseq
    %v1302 = vshrl.u32 %v1301, 7
    %v1303 = vsub.s32 %v1300, %v1302
    %v1304 = vrot.slane %v1282, %v1303
    %v1306 = vunpack.c.l.s4 1966171168
    %v1307 = vunpack.c.0.s8 %v1306
    %v1308 = vlaneseq
    %v1309 = vshrl.u32 %v1308, 7
    %v1310 = vsub.s32 %v1307, %v1309
    %v1311 = vrot.slane %v1283, %v1310
    %v1312 = vcombine.high %v1290, %v1290
    %v1313 = vcombine.high %v1297, %v1297
    %v1314 = vcombine.high %v1304, %v1304
    %v1315 = vcombine.high %v1311, %v1311
    %v1316 = vlaneseq
    %v1317 = vshrl.u32 %v1316, 7
    %v1318 = vsub.s32 0, %v1317
    %v1319 = vrot.slane %v1290, %v1318
    %v1320 = vlaneseq
    %v1321 = vshrl.u32 %v1320, 7
    %v1322 = vsub.s32 0, %v1321
    %v1323 = vrot.slane %v1304, %v1322
    %v1324 = vlaneseq
    %v1325 = vshrl.u32 %v1324, 7
    %v1326 = vsub.s32 0, %v1325
    %v1327 = vrot.slane %v1312, %v1326
    %v1328 = vlaneseq
    %v1329 = vshrl.u32 %v1328, 7
    %v1330 = vsub.s32 0, %v1329
    %v1331 = vrot.slane %v1314, %v1330
    %v1332 = vlaneseq
    %v1333 = vshrl.u32 %v1332, 7
    %v1334 = vsub.s32 0, %v1333
    %v1335 = vrot.slane %v1297, %v1334
    %v1336 = vlaneseq
    %v1337 = vshrl.u32 %v1336, 7
    %v1338 = vsub.s32 0, %v1337
    %v1339 = vrot.slane %v1311, %v1338
    %v1340 = vlaneseq
    %v1341 = vshrl.u32 %v1340, 7
    %v1342 = vsub.s32 0, %v1341
    %v1343 = vrot.slane %v1313, %v1342
    %v1344 = vlaneseq
    %v1345 = vshrl.u32 %v1344, 7
    %v1346 = vsub.s32 0, %v1345
    %v1347 = vrot.slane %v1315, %v1346
    %v1356 = vadd.f32 %v1258, %v1319
    %v1357 = vadd.f32 %v1259, %v1323
    %v1358 = vadd.f32 %v1260, %v1327
    %v1359 = vadd.f32 %v1261, %v1331
    %v1360 = vadd.f32 %v1262, %v1335
    %v1361 = vadd.f32 %v1263, %v1339
    %v1362 = vadd.f32 %v1264, %v1343
    %v1363 = vadd.f32 %v1265, %v1347
    %v1364 = vsel %vm184, %v1356, -inf
    %v1365 = vrot.slane %v1364, 4
    %v1366 = vmax.f32 %v1364, %v1365
    %v1367 = vrot.slane %v1366, 2
    %v1368 = vmax.f32 %v1366, %v1367
    %v1369 = vrot.slane %v1368, 1
    %v1370 = vmax.f32 %v1368, %v1369
    %v1371 = vsel %vm184, %v1357, -inf
    %v1372 = vrot.slane %v1371, 4
    %v1373 = vmax.f32 %v1371, %v1372
    %v1374 = vrot.slane %v1373, 2
    %v1375 = vmax.f32 %v1373, %v1374
    %v1376 = vrot.slane %v1375, 1
    %v1377 = vmax.f32 %v1375, %v1376
    %v1378 = vsel %vm184, %v1358, -inf
    %v1379 = vrot.slane %v1378, 4
    %v1380 = vmax.f32 %v1378, %v1379
    %v1381 = vrot.slane %v1380, 2
    %v1382 = vmax.f32 %v1380, %v1381
    %v1383 = vrot.slane %v1382, 1
    %v1384 = vmax.f32 %v1382, %v1383
    %v1385 = vsel %vm184, %v1359, -inf
    %v1386 = vrot.slane %v1385, 4
    %v1387 = vmax.f32 %v1385, %v1386
    %v1388 = vrot.slane %v1387, 2
    %v1389 = vmax.f32 %v1387, %v1388
    %v1390 = vrot.slane %v1389, 1
    %v1391 = vmax.f32 %v1389, %v1390
    %v1392 = vsel %vm184, %v1360, -inf
    %v1393 = vrot.slane %v1392, 4
    %v1394 = vmax.f32 %v1392, %v1393
    %v1395 = vrot.slane %v1394, 2
    %v1396 = vmax.f32 %v1394, %v1395
    %v1397 = vrot.slane %v1396, 1
    %v1398 = vmax.f32 %v1396, %v1397
    %v1399 = vsel %vm184, %v1361, -inf
    %v1400 = vrot.slane %v1399, 4
    %v1401 = vmax.f32 %v1399, %v1400
    %v1402 = vrot.slane %v1401, 2
    %v1403 = vmax.f32 %v1401, %v1402
    %v1404 = vrot.slane %v1403, 1
    %v1405 = vmax.f32 %v1403, %v1404
    %v1406 = vsel %vm184, %v1362, -inf
    %v1407 = vrot.slane %v1406, 4
    %v1408 = vmax.f32 %v1406, %v1407
    %v1409 = vrot.slane %v1408, 2
    %v1410 = vmax.f32 %v1408, %v1409
    %v1411 = vrot.slane %v1410, 1
    %v1412 = vmax.f32 %v1410, %v1411
    %v1413 = vsel %vm184, %v1363, -inf
    %v1414 = vrot.slane %v1413, 4
    %v1415 = vmax.f32 %v1413, %v1414
    %v1416 = vrot.slane %v1415, 2
    %v1417 = vmax.f32 %v1415, %v1416
    %v1418 = vrot.slane %v1417, 1
    %v1419 = vmax.f32 %v1417, %v1418
    %v1420 = vsub.f32 %v1356, %v1370
    %v1421 = vsub.f32 %v1357, %v1377
    %v1422 = vsub.f32 %v1358, %v1384
    %v1423 = vsub.f32 %v1359, %v1391
    %v1424 = vsub.f32 %v1360, %v1398
    %v1425 = vsub.f32 %v1361, %v1405
    %v1426 = vsub.f32 %v1362, %v1412
    %v1427 = vsub.f32 %v1363, %v1419
    %v1428 = vmul.f32 %v1420, 1.442695
    %v1429 = vpow.pop %v1428
    %v1430 = vmul.f32 %v1421, 1.442695
    %v1431 = vpow.pop %v1430
    %v1432 = vmul.f32 %v1422, 1.442695
    %v1433 = vpow.pop %v1432
    %v1434 = vmul.f32 %v1423, 1.442695
    %v1435 = vpow.pop %v1434
    %v1436 = vmul.f32 %v1424, 1.442695
    %v1437 = vpow.pop %v1436
    %v1438 = vmul.f32 %v1425, 1.442695
    %v1439 = vpow.pop %v1438
    %v1440 = vmul.f32 %v1426, 1.442695
    %v1441 = vpow.pop %v1440
    %v1442 = vmul.f32 %v1427, 1.442695
    %v1443 = vpow.pop %v1442
    %v1444 = vsel %vm184, %v1429, 0.0
    %v1445 = vrot.slane %v1444, 4
    %v1446 = vadd.f32 %v1444, %v1445
    %v1447 = vrot.slane %v1446, 2
    %v1448 = vadd.f32 %v1446, %v1447
    %v1449 = vrot.slane %v1448, 1
    %v1450 = vadd.f32 %v1448, %v1449
    %v1451 = vsel %vm184, %v1431, 0.0
    %v1452 = vrot.slane %v1451, 4
    %v1453 = vadd.f32 %v1451, %v1452
    %v1454 = vrot.slane %v1453, 2
    %v1455 = vadd.f32 %v1453, %v1454
    %v1456 = vrot.slane %v1455, 1
    %v1457 = vadd.f32 %v1455, %v1456
    %v1458 = vsel %vm184, %v1433, 0.0
    %v1459 = vrot.slane %v1458, 4
    %v1460 = vadd.f32 %v1458, %v1459
    %v1461 = vrot.slane %v1460, 2
    %v1462 = vadd.f32 %v1460, %v1461
    %v1463 = vrot.slane %v1462, 1
    %v1464 = vadd.f32 %v1462, %v1463
    %v1465 = vsel %vm184, %v1435, 0.0
    %v1466 = vrot.slane %v1465, 4
    %v1467 = vadd.f32 %v1465, %v1466
    %v1468 = vrot.slane %v1467, 2
    %v1469 = vadd.f32 %v1467, %v1468
    %v1470 = vrot.slane %v1469, 1
    %v1471 = vadd.f32 %v1469, %v1470
    %v1472 = vsel %vm184, %v1437, 0.0
    %v1473 = vrot.slane %v1472, 4
    %v1474 = vadd.f32 %v1472, %v1473
    %v1475 = vrot.slane %v1474, 2
    %v1476 = vadd.f32 %v1474, %v1475
    %v1477 = vrot.slane %v1476, 1
    %v1478 = vadd.f32 %v1476, %v1477
    %v1479 = vsel %vm184, %v1439, 0.0
    %v1480 = vrot.slane %v1479, 4
    %v1481 = vadd.f32 %v1479, %v1480
    %v1482 = vrot.slane %v1481, 2
    %v1483 = vadd.f32 %v1481, %v1482
    %v1484 = vrot.slane %v1483, 1
    %v1485 = vadd.f32 %v1483, %v1484
    %v1486 = vsel %vm184, %v1441, 0.0
    %v1487 = vrot.slane %v1486, 4
    %v1488 = vadd.f32 %v1486, %v1487
    %v1489 = vrot.slane %v1488, 2
    %v1490 = vadd.f32 %v1488, %v1489
    %v1491 = vrot.slane %v1490, 1
    %v1492 = vadd.f32 %v1490, %v1491
    %v1493 = vsel %vm184, %v1443, 0.0
    %v1494 = vrot.slane %v1493, 4
    %v1495 = vadd.f32 %v1493, %v1494
    %v1496 = vrot.slane %v1495, 2
    %v1497 = vadd.f32 %v1495, %v1496
    %v1498 = vrot.slane %v1497, 1
    %v1499 = vadd.f32 %v1497, %v1498
    %v1500 = vlog2.pop %v1450
    %v1501 = vmul.f32 %v1500, 0.6931472
    %v1502 = vlog2.pop %v1457
    %v1503 = vmul.f32 %v1502, 0.6931472
    %v1504 = vlog2.pop %v1464
    %v1505 = vmul.f32 %v1504, 0.6931472
    %v1506 = vlog2.pop %v1471
    %v1507 = vmul.f32 %v1506, 0.6931472
    %v1508 = vlog2.pop %v1478
    %v1509 = vmul.f32 %v1508, 0.6931472
    %v1510 = vlog2.pop %v1485
    %v1511 = vmul.f32 %v1510, 0.6931472
    %v1512 = vlog2.pop %v1492
    %v1513 = vmul.f32 %v1512, 0.6931472
    %v1514 = vlog2.pop %v1499
    %v1515 = vmul.f32 %v1514, 0.6931472
    %v1516 = vadd.f32 %v1370, %v1501
    %v1517 = vadd.f32 %v1377, %v1503
    %v1518 = vadd.f32 %v1384, %v1505
    %v1519 = vadd.f32 %v1391, %v1507
    %v1520 = vadd.f32 %v1398, %v1509
    %v1521 = vadd.f32 %v1405, %v1511
    %v1522 = vadd.f32 %v1412, %v1513
    %v1523 = vadd.f32 %v1419, %v1515
    %vm1524 = vcmp.gt.f32.partialorder %v1257, 0.0
    %v1525 = vsel %vm1524, 1, 0
    %v1526 = vlaneseq
    %v1527 = vshrl.u32 %v1526, 7
    %v1528 = vsub.s32 0, %v1527
    %v1529 = vrot.slane %v1525, %v1528
    %vm1530 = vcmp.eq.s32.totalorder %v1529, 1
    %v1539 = vsel %vm360, %v1517, %v1516
    %v1540 = vsel %vm362, %v1518, %v1539
    %v1541 = vsel %vm364, %v1519, %v1540
    %v1542 = vsel %vm366, %v1520, %v1541
    %v1543 = vsel %vm368, %v1521, %v1542
    %v1544 = vsel %vm370, %v1522, %v1543
    %v1545 = vsel %vm372, %v1523, %v1544
    %v1547 = vsel %vm1530, %v1545, %v1254
    %s1548 = scalar_lea.vmem %s0, 40
    %v1549 = vld [vmem:[%s1548] sm:$0xff]
    %v1550 = vld [vmem:[%s1 + $0x5] sm:$0x1]
    %v1551 = vadd.f32 %v22, %v1547
    %v1552 = vadd.f32 %v29, %v1547
    %v1553 = vadd.f32 %v36, %v1547
    %v1554 = vadd.f32 %v43, %v1547
    %v1555 = vadd.f32 %v50, %v1547
    %v1556 = vadd.f32 %v57, %v1547
    %v1557 = vadd.f32 %v64, %v1547
    %v1558 = vadd.f32 %v71, %v1547
    %v1560 = vcombine.high %v1549, %v1549
    %v1562 = vunpack.c.l.s4 1966171168
    %v1563 = vunpack.c.0.s8 %v1562
    %v1564 = vlaneseq
    %v1565 = vshrl.u32 %v1564, 7
    %v1566 = vsub.s32 %v1563, %v1565
    %v1567 = vrot.slane %v1549, %v1566
    %v1569 = vunpack.c.l.s4 1966171168
    %v1570 = vunpack.c.0.s8 %v1569
    %v1571 = vlaneseq
    %v1572 = vshrl.u32 %v1571, 7
    %v1573 = vsub.s32 %v1570, %v1572
    %v1574 = vrot.slane %v1560, %v1573
    %v1575 = vcombine.high %v1567, %v1567
    %v1576 = vcombine.high %v1574, %v1574
    %v1578 = vunpack.c.l.s4 1966171168
    %v1579 = vunpack.c.0.s8 %v1578
    %v1580 = vlaneseq
    %v1581 = vshrl.u32 %v1580, 7
    %v1582 = vsub.s32 %v1579, %v1581
    %v1583 = vrot.slane %v1567, %v1582
    %v1585 = vunpack.c.l.s4 1966171168
    %v1586 = vunpack.c.0.s8 %v1585
    %v1587 = vlaneseq
    %v1588 = vshrl.u32 %v1587, 7
    %v1589 = vsub.s32 %v1586, %v1588
    %v1590 = vrot.slane %v1574, %v1589
    %v1592 = vunpack.c.l.s4 1966171168
    %v1593 = vunpack.c.0.s8 %v1592
    %v1594 = vlaneseq
    %v1595 = vshrl.u32 %v1594, 7
    %v1596 = vsub.s32 %v1593, %v1595
    %v1597 = vrot.slane %v1575, %v1596
    %v1599 = vunpack.c.l.s4 1966171168
    %v1600 = vunpack.c.0.s8 %v1599
    %v1601 = vlaneseq
    %v1602 = vshrl.u32 %v1601, 7
    %v1603 = vsub.s32 %v1600, %v1602
    %v1604 = vrot.slane %v1576, %v1603
    %v1605 = vcombine.high %v1583, %v1583
    %v1606 = vcombine.high %v1590, %v1590
    %v1607 = vcombine.high %v1597, %v1597
    %v1608 = vcombine.high %v1604, %v1604
    %v1609 = vlaneseq
    %v1610 = vshrl.u32 %v1609, 7
    %v1611 = vsub.s32 0, %v1610
    %v1612 = vrot.slane %v1583, %v1611
    %v1613 = vlaneseq
    %v1614 = vshrl.u32 %v1613, 7
    %v1615 = vsub.s32 0, %v1614
    %v1616 = vrot.slane %v1597, %v1615
    %v1617 = vlaneseq
    %v1618 = vshrl.u32 %v1617, 7
    %v1619 = vsub.s32 0, %v1618
    %v1620 = vrot.slane %v1605, %v1619
    %v1621 = vlaneseq
    %v1622 = vshrl.u32 %v1621, 7
    %v1623 = vsub.s32 0, %v1622
    %v1624 = vrot.slane %v1607, %v1623
    %v1625 = vlaneseq
    %v1626 = vshrl.u32 %v1625, 7
    %v1627 = vsub.s32 0, %v1626
    %v1628 = vrot.slane %v1590, %v1627
    %v1629 = vlaneseq
    %v1630 = vshrl.u32 %v1629, 7
    %v1631 = vsub.s32 0, %v1630
    %v1632 = vrot.slane %v1604, %v1631
    %v1633 = vlaneseq
    %v1634 = vshrl.u32 %v1633, 7
    %v1635 = vsub.s32 0, %v1634
    %v1636 = vrot.slane %v1606, %v1635
    %v1637 = vlaneseq
    %v1638 = vshrl.u32 %v1637, 7
    %v1639 = vsub.s32 0, %v1638
    %v1640 = vrot.slane %v1608, %v1639
    %v1649 = vadd.f32 %v1551, %v1612
    %v1650 = vadd.f32 %v1552, %v1616
    %v1651 = vadd.f32 %v1553, %v1620
    %v1652 = vadd.f32 %v1554, %v1624
    %v1653 = vadd.f32 %v1555, %v1628
    %v1654 = vadd.f32 %v1556, %v1632
    %v1655 = vadd.f32 %v1557, %v1636
    %v1656 = vadd.f32 %v1558, %v1640
    %v1657 = vsel %vm184, %v1649, -inf
    %v1658 = vrot.slane %v1657, 4
    %v1659 = vmax.f32 %v1657, %v1658
    %v1660 = vrot.slane %v1659, 2
    %v1661 = vmax.f32 %v1659, %v1660
    %v1662 = vrot.slane %v1661, 1
    %v1663 = vmax.f32 %v1661, %v1662
    %v1664 = vsel %vm184, %v1650, -inf
    %v1665 = vrot.slane %v1664, 4
    %v1666 = vmax.f32 %v1664, %v1665
    %v1667 = vrot.slane %v1666, 2
    %v1668 = vmax.f32 %v1666, %v1667
    %v1669 = vrot.slane %v1668, 1
    %v1670 = vmax.f32 %v1668, %v1669
    %v1671 = vsel %vm184, %v1651, -inf
    %v1672 = vrot.slane %v1671, 4
    %v1673 = vmax.f32 %v1671, %v1672
    %v1674 = vrot.slane %v1673, 2
    %v1675 = vmax.f32 %v1673, %v1674
    %v1676 = vrot.slane %v1675, 1
    %v1677 = vmax.f32 %v1675, %v1676
    %v1678 = vsel %vm184, %v1652, -inf
    %v1679 = vrot.slane %v1678, 4
    %v1680 = vmax.f32 %v1678, %v1679
    %v1681 = vrot.slane %v1680, 2
    %v1682 = vmax.f32 %v1680, %v1681
    %v1683 = vrot.slane %v1682, 1
    %v1684 = vmax.f32 %v1682, %v1683
    %v1685 = vsel %vm184, %v1653, -inf
    %v1686 = vrot.slane %v1685, 4
    %v1687 = vmax.f32 %v1685, %v1686
    %v1688 = vrot.slane %v1687, 2
    %v1689 = vmax.f32 %v1687, %v1688
    %v1690 = vrot.slane %v1689, 1
    %v1691 = vmax.f32 %v1689, %v1690
    %v1692 = vsel %vm184, %v1654, -inf
    %v1693 = vrot.slane %v1692, 4
    %v1694 = vmax.f32 %v1692, %v1693
    %v1695 = vrot.slane %v1694, 2
    %v1696 = vmax.f32 %v1694, %v1695
    %v1697 = vrot.slane %v1696, 1
    %v1698 = vmax.f32 %v1696, %v1697
    %v1699 = vsel %vm184, %v1655, -inf
    %v1700 = vrot.slane %v1699, 4
    %v1701 = vmax.f32 %v1699, %v1700
    %v1702 = vrot.slane %v1701, 2
    %v1703 = vmax.f32 %v1701, %v1702
    %v1704 = vrot.slane %v1703, 1
    %v1705 = vmax.f32 %v1703, %v1704
    %v1706 = vsel %vm184, %v1656, -inf
    %v1707 = vrot.slane %v1706, 4
    %v1708 = vmax.f32 %v1706, %v1707
    %v1709 = vrot.slane %v1708, 2
    %v1710 = vmax.f32 %v1708, %v1709
    %v1711 = vrot.slane %v1710, 1
    %v1712 = vmax.f32 %v1710, %v1711
    %v1713 = vsub.f32 %v1649, %v1663
    %v1714 = vsub.f32 %v1650, %v1670
    %v1715 = vsub.f32 %v1651, %v1677
    %v1716 = vsub.f32 %v1652, %v1684
    %v1717 = vsub.f32 %v1653, %v1691
    %v1718 = vsub.f32 %v1654, %v1698
    %v1719 = vsub.f32 %v1655, %v1705
    %v1720 = vsub.f32 %v1656, %v1712
    %v1721 = vmul.f32 %v1713, 1.442695
    %v1722 = vpow.pop %v1721
    %v1723 = vmul.f32 %v1714, 1.442695
    %v1724 = vpow.pop %v1723
    %v1725 = vmul.f32 %v1715, 1.442695
    %v1726 = vpow.pop %v1725
    %v1727 = vmul.f32 %v1716, 1.442695
    %v1728 = vpow.pop %v1727
    %v1729 = vmul.f32 %v1717, 1.442695
    %v1730 = vpow.pop %v1729
    %v1731 = vmul.f32 %v1718, 1.442695
    %v1732 = vpow.pop %v1731
    %v1733 = vmul.f32 %v1719, 1.442695
    %v1734 = vpow.pop %v1733
    %v1735 = vmul.f32 %v1720, 1.442695
    %v1736 = vpow.pop %v1735
    %v1737 = vsel %vm184, %v1722, 0.0
    %v1738 = vrot.slane %v1737, 4
    %v1739 = vadd.f32 %v1737, %v1738
    %v1740 = vrot.slane %v1739, 2
    %v1741 = vadd.f32 %v1739, %v1740
    %v1742 = vrot.slane %v1741, 1
    %v1743 = vadd.f32 %v1741, %v1742
    %v1744 = vsel %vm184, %v1724, 0.0
    %v1745 = vrot.slane %v1744, 4
    %v1746 = vadd.f32 %v1744, %v1745
    %v1747 = vrot.slane %v1746, 2
    %v1748 = vadd.f32 %v1746, %v1747
    %v1749 = vrot.slane %v1748, 1
    %v1750 = vadd.f32 %v1748, %v1749
    %v1751 = vsel %vm184, %v1726, 0.0
    %v1752 = vrot.slane %v1751, 4
    %v1753 = vadd.f32 %v1751, %v1752
    %v1754 = vrot.slane %v1753, 2
    %v1755 = vadd.f32 %v1753, %v1754
    %v1756 = vrot.slane %v1755, 1
    %v1757 = vadd.f32 %v1755, %v1756
    %v1758 = vsel %vm184, %v1728, 0.0
    %v1759 = vrot.slane %v1758, 4
    %v1760 = vadd.f32 %v1758, %v1759
    %v1761 = vrot.slane %v1760, 2
    %v1762 = vadd.f32 %v1760, %v1761
    %v1763 = vrot.slane %v1762, 1
    %v1764 = vadd.f32 %v1762, %v1763
    %v1765 = vsel %vm184, %v1730, 0.0
    %v1766 = vrot.slane %v1765, 4
    %v1767 = vadd.f32 %v1765, %v1766
    %v1768 = vrot.slane %v1767, 2
    %v1769 = vadd.f32 %v1767, %v1768
    %v1770 = vrot.slane %v1769, 1
    %v1771 = vadd.f32 %v1769, %v1770
    %v1772 = vsel %vm184, %v1732, 0.0
    %v1773 = vrot.slane %v1772, 4
    %v1774 = vadd.f32 %v1772, %v1773
    %v1775 = vrot.slane %v1774, 2
    %v1776 = vadd.f32 %v1774, %v1775
    %v1777 = vrot.slane %v1776, 1
    %v1778 = vadd.f32 %v1776, %v1777
    %v1779 = vsel %vm184, %v1734, 0.0
    %v1780 = vrot.slane %v1779, 4
    %v1781 = vadd.f32 %v1779, %v1780
    %v1782 = vrot.slane %v1781, 2
    %v1783 = vadd.f32 %v1781, %v1782
    %v1784 = vrot.slane %v1783, 1
    %v1785 = vadd.f32 %v1783, %v1784
    %v1786 = vsel %vm184, %v1736, 0.0
    %v1787 = vrot.slane %v1786, 4
    %v1788 = vadd.f32 %v1786, %v1787
    %v1789 = vrot.slane %v1788, 2
    %v1790 = vadd.f32 %v1788, %v1789
    %v1791 = vrot.slane %v1790, 1
    %v1792 = vadd.f32 %v1790, %v1791
    %v1793 = vlog2.pop %v1743
    %v1794 = vmul.f32 %v1793, 0.6931472
    %v1795 = vlog2.pop %v1750
    %v1796 = vmul.f32 %v1795, 0.6931472
    %v1797 = vlog2.pop %v1757
    %v1798 = vmul.f32 %v1797, 0.6931472
    %v1799 = vlog2.pop %v1764
    %v1800 = vmul.f32 %v1799, 0.6931472
    %v1801 = vlog2.pop %v1771
    %v1802 = vmul.f32 %v1801, 0.6931472
    %v1803 = vlog2.pop %v1778
    %v1804 = vmul.f32 %v1803, 0.6931472
    %v1805 = vlog2.pop %v1785
    %v1806 = vmul.f32 %v1805, 0.6931472
    %v1807 = vlog2.pop %v1792
    %v1808 = vmul.f32 %v1807, 0.6931472
    %v1809 = vadd.f32 %v1663, %v1794
    %v1810 = vadd.f32 %v1670, %v1796
    %v1811 = vadd.f32 %v1677, %v1798
    %v1812 = vadd.f32 %v1684, %v1800
    %v1813 = vadd.f32 %v1691, %v1802
    %v1814 = vadd.f32 %v1698, %v1804
    %v1815 = vadd.f32 %v1705, %v1806
    %v1816 = vadd.f32 %v1712, %v1808
    %vm1817 = vcmp.gt.f32.partialorder %v1550, 0.0
    %v1818 = vsel %vm1817, 1, 0
    %v1819 = vlaneseq
    %v1820 = vshrl.u32 %v1819, 7
    %v1821 = vsub.s32 0, %v1820
    %v1822 = vrot.slane %v1818, %v1821
    %vm1823 = vcmp.eq.s32.totalorder %v1822, 1
    %v1832 = vsel %vm360, %v1810, %v1809
    %v1833 = vsel %vm362, %v1811, %v1832
    %v1834 = vsel %vm364, %v1812, %v1833
    %v1835 = vsel %vm366, %v1813, %v1834
    %v1836 = vsel %vm368, %v1814, %v1835
    %v1837 = vsel %vm370, %v1815, %v1836
    %v1838 = vsel %vm372, %v1816, %v1837
    %v1840 = vsel %vm1823, %v1838, %v1547
    %s1841 = scalar_lea.vmem %s0, 48
    %v1842 = vld [vmem:[%s1841] sm:$0xff]
    %v1843 = vld [vmem:[%s1 + $0x6] sm:$0x1]
    %v1844 = vadd.f32 %v22, %v1840
    %v1845 = vadd.f32 %v29, %v1840
    %v1846 = vadd.f32 %v36, %v1840
    %v1847 = vadd.f32 %v43, %v1840
    %v1848 = vadd.f32 %v50, %v1840
    %v1849 = vadd.f32 %v57, %v1840
    %v1850 = vadd.f32 %v64, %v1840
    %v1851 = vadd.f32 %v71, %v1840
    %v1853 = vcombine.high %v1842, %v1842
    %v1855 = vunpack.c.l.s4 1966171168
    %v1856 = vunpack.c.0.s8 %v1855
    %v1857 = vlaneseq
    %v1858 = vshrl.u32 %v1857, 7
    %v1859 = vsub.s32 %v1856, %v1858
    %v1860 = vrot.slane %v1842, %v1859
    %v1862 = vunpack.c.l.s4 1966171168
    %v1863 = vunpack.c.0.s8 %v1862
    %v1864 = vlaneseq
    %v1865 = vshrl.u32 %v1864, 7
    %v1866 = vsub.s32 %v1863, %v1865
    %v1867 = vrot.slane %v1853, %v1866
    %v1868 = vcombine.high %v1860, %v1860
    %v1869 = vcombine.high %v1867, %v1867
    %v1871 = vunpack.c.l.s4 1966171168
    %v1872 = vunpack.c.0.s8 %v1871
    %v1873 = vlaneseq
    %v1874 = vshrl.u32 %v1873, 7
    %v1875 = vsub.s32 %v1872, %v1874
    %v1876 = vrot.slane %v1860, %v1875
    %v1878 = vunpack.c.l.s4 1966171168
    %v1879 = vunpack.c.0.s8 %v1878
    %v1880 = vlaneseq
    %v1881 = vshrl.u32 %v1880, 7
    %v1882 = vsub.s32 %v1879, %v1881
    %v1883 = vrot.slane %v1867, %v1882
    %v1885 = vunpack.c.l.s4 1966171168
    %v1886 = vunpack.c.0.s8 %v1885
    %v1887 = vlaneseq
    %v1888 = vshrl.u32 %v1887, 7
    %v1889 = vsub.s32 %v1886, %v1888
    %v1890 = vrot.slane %v1868, %v1889
    %v1892 = vunpack.c.l.s4 1966171168
    %v1893 = vunpack.c.0.s8 %v1892
    %v1894 = vlaneseq
    %v1895 = vshrl.u32 %v1894, 7
    %v1896 = vsub.s32 %v1893, %v1895
    %v1897 = vrot.slane %v1869, %v1896
    %v1898 = vcombine.high %v1876, %v1876
    %v1899 = vcombine.high %v1883, %v1883
    %v1900 = vcombine.high %v1890, %v1890
    %v1901 = vcombine.high %v1897, %v1897
    %v1902 = vlaneseq
    %v1903 = vshrl.u32 %v1902, 7
    %v1904 = vsub.s32 0, %v1903
    %v1905 = vrot.slane %v1876, %v1904
    %v1906 = vlaneseq
    %v1907 = vshrl.u32 %v1906, 7
    %v1908 = vsub.s32 0, %v1907
    %v1909 = vrot.slane %v1890, %v1908
    %v1910 = vlaneseq
    %v1911 = vshrl.u32 %v1910, 7
    %v1912 = vsub.s32 0, %v1911
    %v1913 = vrot.slane %v1898, %v1912
    %v1914 = vlaneseq
    %v1915 = vshrl.u32 %v1914, 7
    %v1916 = vsub.s32 0, %v1915
    %v1917 = vrot.slane %v1900, %v1916
    %v1918 = vlaneseq
    %v1919 = vshrl.u32 %v1918, 7
    %v1920 = vsub.s32 0, %v1919
    %v1921 = vrot.slane %v1883, %v1920
    %v1922 = vlaneseq
    %v1923 = vshrl.u32 %v1922, 7
    %v1924 = vsub.s32 0, %v1923
    %v1925 = vrot.slane %v1897, %v1924
    %v1926 = vlaneseq
    %v1927 = vshrl.u32 %v1926, 7
    %v1928 = vsub.s32 0, %v1927
    %v1929 = vrot.slane %v1899, %v1928
    %v1930 = vlaneseq
    %v1931 = vshrl.u32 %v1930, 7
    %v1932 = vsub.s32 0, %v1931
    %v1933 = vrot.slane %v1901, %v1932
    %v1942 = vadd.f32 %v1844, %v1905
    %v1943 = vadd.f32 %v1845, %v1909
    %v1944 = vadd.f32 %v1846, %v1913
    %v1945 = vadd.f32 %v1847, %v1917
    %v1946 = vadd.f32 %v1848, %v1921
    %v1947 = vadd.f32 %v1849, %v1925
    %v1948 = vadd.f32 %v1850, %v1929
    %v1949 = vadd.f32 %v1851, %v1933
    %v1950 = vsel %vm184, %v1942, -inf
    %v1951 = vrot.slane %v1950, 4
    %v1952 = vmax.f32 %v1950, %v1951
    %v1953 = vrot.slane %v1952, 2
    %v1954 = vmax.f32 %v1952, %v1953
    %v1955 = vrot.slane %v1954, 1
    %v1956 = vmax.f32 %v1954, %v1955
    %v1957 = vsel %vm184, %v1943, -inf
    %v1958 = vrot.slane %v1957, 4
    %v1959 = vmax.f32 %v1957, %v1958
    %v1960 = vrot.slane %v1959, 2
    %v1961 = vmax.f32 %v1959, %v1960
    %v1962 = vrot.slane %v1961, 1
    %v1963 = vmax.f32 %v1961, %v1962
    %v1964 = vsel %vm184, %v1944, -inf
    %v1965 = vrot.slane %v1964, 4
    %v1966 = vmax.f32 %v1964, %v1965
    %v1967 = vrot.slane %v1966, 2
    %v1968 = vmax.f32 %v1966, %v1967
    %v1969 = vrot.slane %v1968, 1
    %v1970 = vmax.f32 %v1968, %v1969
    %v1971 = vsel %vm184, %v1945, -inf
    %v1972 = vrot.slane %v1971, 4
    %v1973 = vmax.f32 %v1971, %v1972
    %v1974 = vrot.slane %v1973, 2
    %v1975 = vmax.f32 %v1973, %v1974
    %v1976 = vrot.slane %v1975, 1
    %v1977 = vmax.f32 %v1975, %v1976
    %v1978 = vsel %vm184, %v1946, -inf
    %v1979 = vrot.slane %v1978, 4
    %v1980 = vmax.f32 %v1978, %v1979
    %v1981 = vrot.slane %v1980, 2
    %v1982 = vmax.f32 %v1980, %v1981
    %v1983 = vrot.slane %v1982, 1
    %v1984 = vmax.f32 %v1982, %v1983
    %v1985 = vsel %vm184, %v1947, -inf
    %v1986 = vrot.slane %v1985, 4
    %v1987 = vmax.f32 %v1985, %v1986
    %v1988 = vrot.slane %v1987, 2
    %v1989 = vmax.f32 %v1987, %v1988
    %v1990 = vrot.slane %v1989, 1
    %v1991 = vmax.f32 %v1989, %v1990
    %v1992 = vsel %vm184, %v1948, -inf
    %v1993 = vrot.slane %v1992, 4
    %v1994 = vmax.f32 %v1992, %v1993
    %v1995 = vrot.slane %v1994, 2
    %v1996 = vmax.f32 %v1994, %v1995
    %v1997 = vrot.slane %v1996, 1
    %v1998 = vmax.f32 %v1996, %v1997
    %v1999 = vsel %vm184, %v1949, -inf
    %v2000 = vrot.slane %v1999, 4
    %v2001 = vmax.f32 %v1999, %v2000
    %v2002 = vrot.slane %v2001, 2
    %v2003 = vmax.f32 %v2001, %v2002
    %v2004 = vrot.slane %v2003, 1
    %v2005 = vmax.f32 %v2003, %v2004
    %v2006 = vsub.f32 %v1942, %v1956
    %v2007 = vsub.f32 %v1943, %v1963
    %v2008 = vsub.f32 %v1944, %v1970
    %v2009 = vsub.f32 %v1945, %v1977
    %v2010 = vsub.f32 %v1946, %v1984
    %v2011 = vsub.f32 %v1947, %v1991
    %v2012 = vsub.f32 %v1948, %v1998
    %v2013 = vsub.f32 %v1949, %v2005
    %v2014 = vmul.f32 %v2006, 1.442695
    %v2015 = vpow.pop %v2014
    %v2016 = vmul.f32 %v2007, 1.442695
    %v2017 = vpow.pop %v2016
    %v2018 = vmul.f32 %v2008, 1.442695
    %v2019 = vpow.pop %v2018
    %v2020 = vmul.f32 %v2009, 1.442695
    %v2021 = vpow.pop %v2020
    %v2022 = vmul.f32 %v2010, 1.442695
    %v2023 = vpow.pop %v2022
    %v2024 = vmul.f32 %v2011, 1.442695
    %v2025 = vpow.pop %v2024
    %v2026 = vmul.f32 %v2012, 1.442695
    %v2027 = vpow.pop %v2026
    %v2028 = vmul.f32 %v2013, 1.442695
    %v2029 = vpow.pop %v2028
    %v2030 = vsel %vm184, %v2015, 0.0
    %v2031 = vrot.slane %v2030, 4
    %v2032 = vadd.f32 %v2030, %v2031
    %v2033 = vrot.slane %v2032, 2
    %v2034 = vadd.f32 %v2032, %v2033
    %v2035 = vrot.slane %v2034, 1
    %v2036 = vadd.f32 %v2034, %v2035
    %v2037 = vsel %vm184, %v2017, 0.0
    %v2038 = vrot.slane %v2037, 4
    %v2039 = vadd.f32 %v2037, %v2038
    %v2040 = vrot.slane %v2039, 2
    %v2041 = vadd.f32 %v2039, %v2040
    %v2042 = vrot.slane %v2041, 1
    %v2043 = vadd.f32 %v2041, %v2042
    %v2044 = vsel %vm184, %v2019, 0.0
    %v2045 = vrot.slane %v2044, 4
    %v2046 = vadd.f32 %v2044, %v2045
    %v2047 = vrot.slane %v2046, 2
    %v2048 = vadd.f32 %v2046, %v2047
    %v2049 = vrot.slane %v2048, 1
    %v2050 = vadd.f32 %v2048, %v2049
    %v2051 = vsel %vm184, %v2021, 0.0
    %v2052 = vrot.slane %v2051, 4
    %v2053 = vadd.f32 %v2051, %v2052
    %v2054 = vrot.slane %v2053, 2
    %v2055 = vadd.f32 %v2053, %v2054
    %v2056 = vrot.slane %v2055, 1
    %v2057 = vadd.f32 %v2055, %v2056
    %v2058 = vsel %vm184, %v2023, 0.0
    %v2059 = vrot.slane %v2058, 4
    %v2060 = vadd.f32 %v2058, %v2059
    %v2061 = vrot.slane %v2060, 2
    %v2062 = vadd.f32 %v2060, %v2061
    %v2063 = vrot.slane %v2062, 1
    %v2064 = vadd.f32 %v2062, %v2063
    %v2065 = vsel %vm184, %v2025, 0.0
    %v2066 = vrot.slane %v2065, 4
    %v2067 = vadd.f32 %v2065, %v2066
    %v2068 = vrot.slane %v2067, 2
    %v2069 = vadd.f32 %v2067, %v2068
    %v2070 = vrot.slane %v2069, 1
    %v2071 = vadd.f32 %v2069, %v2070
    %v2072 = vsel %vm184, %v2027, 0.0
    %v2073 = vrot.slane %v2072, 4
    %v2074 = vadd.f32 %v2072, %v2073
    %v2075 = vrot.slane %v2074, 2
    %v2076 = vadd.f32 %v2074, %v2075
    %v2077 = vrot.slane %v2076, 1
    %v2078 = vadd.f32 %v2076, %v2077
    %v2079 = vsel %vm184, %v2029, 0.0
    %v2080 = vrot.slane %v2079, 4
    %v2081 = vadd.f32 %v2079, %v2080
    %v2082 = vrot.slane %v2081, 2
    %v2083 = vadd.f32 %v2081, %v2082
    %v2084 = vrot.slane %v2083, 1
    %v2085 = vadd.f32 %v2083, %v2084
    %v2086 = vlog2.pop %v2036
    %v2087 = vmul.f32 %v2086, 0.6931472
    %v2088 = vlog2.pop %v2043
    %v2089 = vmul.f32 %v2088, 0.6931472
    %v2090 = vlog2.pop %v2050
    %v2091 = vmul.f32 %v2090, 0.6931472
    %v2092 = vlog2.pop %v2057
    %v2093 = vmul.f32 %v2092, 0.6931472
    %v2094 = vlog2.pop %v2064
    %v2095 = vmul.f32 %v2094, 0.6931472
    %v2096 = vlog2.pop %v2071
    %v2097 = vmul.f32 %v2096, 0.6931472
    %v2098 = vlog2.pop %v2078
    %v2099 = vmul.f32 %v2098, 0.6931472
    %v2100 = vlog2.pop %v2085
    %v2101 = vmul.f32 %v2100, 0.6931472
    %v2102 = vadd.f32 %v1956, %v2087
    %v2103 = vadd.f32 %v1963, %v2089
    %v2104 = vadd.f32 %v1970, %v2091
    %v2105 = vadd.f32 %v1977, %v2093
    %v2106 = vadd.f32 %v1984, %v2095
    %v2107 = vadd.f32 %v1991, %v2097
    %v2108 = vadd.f32 %v1998, %v2099
    %v2109 = vadd.f32 %v2005, %v2101
    %vm2110 = vcmp.gt.f32.partialorder %v1843, 0.0
    %v2111 = vsel %vm2110, 1, 0
    %v2112 = vlaneseq
    %v2113 = vshrl.u32 %v2112, 7
    %v2114 = vsub.s32 0, %v2113
    %v2115 = vrot.slane %v2111, %v2114
    %vm2116 = vcmp.eq.s32.totalorder %v2115, 1
    %v2125 = vsel %vm360, %v2103, %v2102
    %v2126 = vsel %vm362, %v2104, %v2125
    %v2127 = vsel %vm364, %v2105, %v2126
    %v2128 = vsel %vm366, %v2106, %v2127
    %v2129 = vsel %vm368, %v2107, %v2128
    %v2130 = vsel %vm370, %v2108, %v2129
    %v2131 = vsel %vm372, %v2109, %v2130
    %v2133 = vsel %vm2116, %v2131, %v1840
    %s2134 = scalar_lea.vmem %s0, 56
    %v2135 = vld [vmem:[%s2134] sm:$0xff]
    %v2136 = vld [vmem:[%s1 + $0x7] sm:$0x1]
    %v2137 = vadd.f32 %v22, %v2133
    %v2138 = vadd.f32 %v29, %v2133
    %v2139 = vadd.f32 %v36, %v2133
    %v2140 = vadd.f32 %v43, %v2133
    %v2141 = vadd.f32 %v50, %v2133
    %v2142 = vadd.f32 %v57, %v2133
    %v2143 = vadd.f32 %v64, %v2133
    %v2144 = vadd.f32 %v71, %v2133
    %v2146 = vcombine.high %v2135, %v2135
    %v2148 = vunpack.c.l.s4 1966171168
    %v2149 = vunpack.c.0.s8 %v2148
    %v2150 = vlaneseq
    %v2151 = vshrl.u32 %v2150, 7
    %v2152 = vsub.s32 %v2149, %v2151
    %v2153 = vrot.slane %v2135, %v2152
    %v2155 = vunpack.c.l.s4 1966171168
    %v2156 = vunpack.c.0.s8 %v2155
    %v2157 = vlaneseq
    %v2158 = vshrl.u32 %v2157, 7
    %v2159 = vsub.s32 %v2156, %v2158
    %v2160 = vrot.slane %v2146, %v2159
    %v2161 = vcombine.high %v2153, %v2153
    %v2162 = vcombine.high %v2160, %v2160
    %v2164 = vunpack.c.l.s4 1966171168
    %v2165 = vunpack.c.0.s8 %v2164
    %v2166 = vlaneseq
    %v2167 = vshrl.u32 %v2166, 7
    %v2168 = vsub.s32 %v2165, %v2167
    %v2169 = vrot.slane %v2153, %v2168
    %v2171 = vunpack.c.l.s4 1966171168
    %v2172 = vunpack.c.0.s8 %v2171
    %v2173 = vlaneseq
    %v2174 = vshrl.u32 %v2173, 7
    %v2175 = vsub.s32 %v2172, %v2174
    %v2176 = vrot.slane %v2160, %v2175
    %v2178 = vunpack.c.l.s4 1966171168
    %v2179 = vunpack.c.0.s8 %v2178
    %v2180 = vlaneseq
    %v2181 = vshrl.u32 %v2180, 7
    %v2182 = vsub.s32 %v2179, %v2181
    %v2183 = vrot.slane %v2161, %v2182
    %v2185 = vunpack.c.l.s4 1966171168
    %v2186 = vunpack.c.0.s8 %v2185
    %v2187 = vlaneseq
    %v2188 = vshrl.u32 %v2187, 7
    %v2189 = vsub.s32 %v2186, %v2188
    %v2190 = vrot.slane %v2162, %v2189
    %v2191 = vcombine.high %v2169, %v2169
    %v2192 = vcombine.high %v2176, %v2176
    %v2193 = vcombine.high %v2183, %v2183
    %v2194 = vcombine.high %v2190, %v2190
    %v2195 = vlaneseq
    %v2196 = vshrl.u32 %v2195, 7
    %v2197 = vsub.s32 0, %v2196
    %v2198 = vrot.slane %v2169, %v2197
    %v2199 = vlaneseq
    %v2200 = vshrl.u32 %v2199, 7
    %v2201 = vsub.s32 0, %v2200
    %v2202 = vrot.slane %v2183, %v2201
    %v2203 = vlaneseq
    %v2204 = vshrl.u32 %v2203, 7
    %v2205 = vsub.s32 0, %v2204
    %v2206 = vrot.slane %v2191, %v2205
    %v2207 = vlaneseq
    %v2208 = vshrl.u32 %v2207, 7
    %v2209 = vsub.s32 0, %v2208
    %v2210 = vrot.slane %v2193, %v2209
    %v2211 = vlaneseq
    %v2212 = vshrl.u32 %v2211, 7
    %v2213 = vsub.s32 0, %v2212
    %v2214 = vrot.slane %v2176, %v2213
    %v2215 = vlaneseq
    %v2216 = vshrl.u32 %v2215, 7
    %v2217 = vsub.s32 0, %v2216
    %v2218 = vrot.slane %v2190, %v2217
    %v2219 = vlaneseq
    %v2220 = vshrl.u32 %v2219, 7
    %v2221 = vsub.s32 0, %v2220
    %v2222 = vrot.slane %v2192, %v2221
    %v2223 = vlaneseq
    %v2224 = vshrl.u32 %v2223, 7
    %v2225 = vsub.s32 0, %v2224
    %v2226 = vrot.slane %v2194, %v2225
    %v2235 = vadd.f32 %v2137, %v2198
    %v2236 = vadd.f32 %v2138, %v2202
    %v2237 = vadd.f32 %v2139, %v2206
    %v2238 = vadd.f32 %v2140, %v2210
    %v2239 = vadd.f32 %v2141, %v2214
    %v2240 = vadd.f32 %v2142, %v2218
    %v2241 = vadd.f32 %v2143, %v2222
    %v2242 = vadd.f32 %v2144, %v2226
    %v2243 = vsel %vm184, %v2235, -inf
    %v2244 = vrot.slane %v2243, 4
    %v2245 = vmax.f32 %v2243, %v2244
    %v2246 = vrot.slane %v2245, 2
    %v2247 = vmax.f32 %v2245, %v2246
    %v2248 = vrot.slane %v2247, 1
    %v2249 = vmax.f32 %v2247, %v2248
    %v2250 = vsel %vm184, %v2236, -inf
    %v2251 = vrot.slane %v2250, 4
    %v2252 = vmax.f32 %v2250, %v2251
    %v2253 = vrot.slane %v2252, 2
    %v2254 = vmax.f32 %v2252, %v2253
    %v2255 = vrot.slane %v2254, 1
    %v2256 = vmax.f32 %v2254, %v2255
    %v2257 = vsel %vm184, %v2237, -inf
    %v2258 = vrot.slane %v2257, 4
    %v2259 = vmax.f32 %v2257, %v2258
    %v2260 = vrot.slane %v2259, 2
    %v2261 = vmax.f32 %v2259, %v2260
    %v2262 = vrot.slane %v2261, 1
    %v2263 = vmax.f32 %v2261, %v2262
    %v2264 = vsel %vm184, %v2238, -inf
    %v2265 = vrot.slane %v2264, 4
    %v2266 = vmax.f32 %v2264, %v2265
    %v2267 = vrot.slane %v2266, 2
    %v2268 = vmax.f32 %v2266, %v2267
    %v2269 = vrot.slane %v2268, 1
    %v2270 = vmax.f32 %v2268, %v2269
    %v2271 = vsel %vm184, %v2239, -inf
    %v2272 = vrot.slane %v2271, 4
    %v2273 = vmax.f32 %v2271, %v2272
    %v2274 = vrot.slane %v2273, 2
    %v2275 = vmax.f32 %v2273, %v2274
    %v2276 = vrot.slane %v2275, 1
    %v2277 = vmax.f32 %v2275, %v2276
    %v2278 = vsel %vm184, %v2240, -inf
    %v2279 = vrot.slane %v2278, 4
    %v2280 = vmax.f32 %v2278, %v2279
    %v2281 = vrot.slane %v2280, 2
    %v2282 = vmax.f32 %v2280, %v2281
    %v2283 = vrot.slane %v2282, 1
    %v2284 = vmax.f32 %v2282, %v2283
    %v2285 = vsel %vm184, %v2241, -inf
    %v2286 = vrot.slane %v2285, 4
    %v2287 = vmax.f32 %v2285, %v2286
    %v2288 = vrot.slane %v2287, 2
    %v2289 = vmax.f32 %v2287, %v2288
    %v2290 = vrot.slane %v2289, 1
    %v2291 = vmax.f32 %v2289, %v2290
    %v2292 = vsel %vm184, %v2242, -inf
    %v2293 = vrot.slane %v2292, 4
    %v2294 = vmax.f32 %v2292, %v2293
    %v2295 = vrot.slane %v2294, 2
    %v2296 = vmax.f32 %v2294, %v2295
    %v2297 = vrot.slane %v2296, 1
    %v2298 = vmax.f32 %v2296, %v2297
    %v2299 = vsub.f32 %v2235, %v2249
    %v2300 = vsub.f32 %v2236, %v2256
    %v2301 = vsub.f32 %v2237, %v2263
    %v2302 = vsub.f32 %v2238, %v2270
    %v2303 = vsub.f32 %v2239, %v2277
    %v2304 = vsub.f32 %v2240, %v2284
    %v2305 = vsub.f32 %v2241, %v2291
    %v2306 = vsub.f32 %v2242, %v2298
    %v2307 = vmul.f32 %v2299, 1.442695
    %v2308 = vpow.pop %v2307
    %v2309 = vmul.f32 %v2300, 1.442695
    %v2310 = vpow.pop %v2309
    %v2311 = vmul.f32 %v2301, 1.442695
    %v2312 = vpow.pop %v2311
    %v2313 = vmul.f32 %v2302, 1.442695
    %v2314 = vpow.pop %v2313
    %v2315 = vmul.f32 %v2303, 1.442695
    %v2316 = vpow.pop %v2315
    %v2317 = vmul.f32 %v2304, 1.442695
    %v2318 = vpow.pop %v2317
    %v2319 = vmul.f32 %v2305, 1.442695
    %v2320 = vpow.pop %v2319
    %v2321 = vmul.f32 %v2306, 1.442695
    %v2322 = vpow.pop %v2321
    %v2323 = vsel %vm184, %v2308, 0.0
    %v2324 = vrot.slane %v2323, 4
    %v2325 = vadd.f32 %v2323, %v2324
    %v2326 = vrot.slane %v2325, 2
    %v2327 = vadd.f32 %v2325, %v2326
    %v2328 = vrot.slane %v2327, 1
    %v2329 = vadd.f32 %v2327, %v2328
    %v2330 = vsel %vm184, %v2310, 0.0
    %v2331 = vrot.slane %v2330, 4
    %v2332 = vadd.f32 %v2330, %v2331
    %v2333 = vrot.slane %v2332, 2
    %v2334 = vadd.f32 %v2332, %v2333
    %v2335 = vrot.slane %v2334, 1
    %v2336 = vadd.f32 %v2334, %v2335
    %v2337 = vsel %vm184, %v2312, 0.0
    %v2338 = vrot.slane %v2337, 4
    %v2339 = vadd.f32 %v2337, %v2338
    %v2340 = vrot.slane %v2339, 2
    %v2341 = vadd.f32 %v2339, %v2340
    %v2342 = vrot.slane %v2341, 1
    %v2343 = vadd.f32 %v2341, %v2342
    %v2344 = vsel %vm184, %v2314, 0.0
    %v2345 = vrot.slane %v2344, 4
    %v2346 = vadd.f32 %v2344, %v2345
    %v2347 = vrot.slane %v2346, 2
    %v2348 = vadd.f32 %v2346, %v2347
    %v2349 = vrot.slane %v2348, 1
    %v2350 = vadd.f32 %v2348, %v2349
    %v2351 = vsel %vm184, %v2316, 0.0
    %v2352 = vrot.slane %v2351, 4
    %v2353 = vadd.f32 %v2351, %v2352
    %v2354 = vrot.slane %v2353, 2
    %v2355 = vadd.f32 %v2353, %v2354
    %v2356 = vrot.slane %v2355, 1
    %v2357 = vadd.f32 %v2355, %v2356
    %v2358 = vsel %vm184, %v2318, 0.0
    %v2359 = vrot.slane %v2358, 4
    %v2360 = vadd.f32 %v2358, %v2359
    %v2361 = vrot.slane %v2360, 2
    %v2362 = vadd.f32 %v2360, %v2361
    %v2363 = vrot.slane %v2362, 1
    %v2364 = vadd.f32 %v2362, %v2363
    %v2365 = vsel %vm184, %v2320, 0.0
    %v2366 = vrot.slane %v2365, 4
    %v2367 = vadd.f32 %v2365, %v2366
    %v2368 = vrot.slane %v2367, 2
    %v2369 = vadd.f32 %v2367, %v2368
    %v2370 = vrot.slane %v2369, 1
    %v2371 = vadd.f32 %v2369, %v2370
    %v2372 = vsel %vm184, %v2322, 0.0
    %v2373 = vrot.slane %v2372, 4
    %v2374 = vadd.f32 %v2372, %v2373
    %v2375 = vrot.slane %v2374, 2
    %v2376 = vadd.f32 %v2374, %v2375
    %v2377 = vrot.slane %v2376, 1
    %v2378 = vadd.f32 %v2376, %v2377
    %v2379 = vlog2.pop %v2329
    %v2380 = vmul.f32 %v2379, 0.6931472
    %v2381 = vlog2.pop %v2336
    %v2382 = vmul.f32 %v2381, 0.6931472
    %v2383 = vlog2.pop %v2343
    %v2384 = vmul.f32 %v2383, 0.6931472
    %v2385 = vlog2.pop %v2350
    %v2386 = vmul.f32 %v2385, 0.6931472
    %v2387 = vlog2.pop %v2357
    %v2388 = vmul.f32 %v2387, 0.6931472
    %v2389 = vlog2.pop %v2364
    %v2390 = vmul.f32 %v2389, 0.6931472
    %v2391 = vlog2.pop %v2371
    %v2392 = vmul.f32 %v2391, 0.6931472
    %v2393 = vlog2.pop %v2378
    %v2394 = vmul.f32 %v2393, 0.6931472
    %v2395 = vadd.f32 %v2249, %v2380
    %v2396 = vadd.f32 %v2256, %v2382
    %v2397 = vadd.f32 %v2263, %v2384
    %v2398 = vadd.f32 %v2270, %v2386
    %v2399 = vadd.f32 %v2277, %v2388
    %v2400 = vadd.f32 %v2284, %v2390
    %v2401 = vadd.f32 %v2291, %v2392
    %v2402 = vadd.f32 %v2298, %v2394
    %vm2403 = vcmp.gt.f32.partialorder %v2136, 0.0
    %v2404 = vsel %vm2403, 1, 0
    %v2405 = vlaneseq
    %v2406 = vshrl.u32 %v2405, 7
    %v2407 = vsub.s32 0, %v2406
    %v2408 = vrot.slane %v2404, %v2407
    %vm2409 = vcmp.eq.s32.totalorder %v2408, 1
    %v2418 = vsel %vm360, %v2396, %v2395
    %v2419 = vsel %vm362, %v2397, %v2418
    %v2420 = vsel %vm364, %v2398, %v2419
    %v2421 = vsel %vm366, %v2399, %v2420
    %v2422 = vsel %vm368, %v2400, %v2421
    %v2423 = vsel %vm370, %v2401, %v2422
    %v2424 = vsel %vm372, %v2402, %v2423
    %v2426 = vsel %vm2409, %v2424, %v2133
    %v2427 = vadd.f32 %v2426, %v71
    %v2428 = vsel %vm184, %v2427, -inf
    %v2429 = vrot.slane %v2428, 4
    %v2430 = vmax.f32 %v2428, %v2429
    %v2431 = vrot.slane %v2430, 2
    %v2432 = vmax.f32 %v2430, %v2431
    %v2433 = vrot.slane %v2432, 1
    %v2434 = vmax.f32 %v2432, %v2433
    %v2435 = vsub.f32 %v2427, %v2434
    %v2436 = vmul.f32 %v2435, 1.442695
    %v2437 = vpow.pop %v2436
    %v2438 = vsel %vm184, %v2437, 0.0
    %v2439 = vrot.slane %v2438, 4
    %v2440 = vadd.f32 %v2438, %v2439
    %v2441 = vrot.slane %v2440, 2
    %v2442 = vadd.f32 %v2440, %v2441
    %v2443 = vrot.slane %v2442, 1
    %v2444 = vadd.f32 %v2442, %v2443
    %v2445 = vlog2.pop %v2444
    %v2446 = vmul.f32 %v2445, 0.6931472
    %v2447 = vadd.f32 %v2434, %v2446
    %vm2448 = vcmask 24576
    %2449 = vst.msk [vmem:[#allocation2] sm:$0x1] %vm2448, %v2447
    // Predicated region
    $region14: #{tpu_custom_call.1} parent=1 // pred_check
      _
    $region15: #{tpu_custom_call.1} parent=1 // pred_check_branch
      %2451 = sbr.rel (0) target = $region17
    $region16: #{tpu_custom_call.1} parent=1 // pred_region
      %s2453 = ssub.s32 16, 16
      %2454 = vsyncadd [#allocation3], %s2453
      %s2456 = sshll.u32 [#allocation2], 4
      %s2457 = int_to_ptr.vmem [resolvable:$true] %s2456
      %2459 = dma.vmem_to_hbm [thread:$0]  %s2457, 16, %s3, [#allocation3]
    $region17: #{tpu_custom_call.1} parent=1 // pred_fallthru
      _
    // Predicated region
    $region18: #{tpu_custom_call.1} parent=1 // pred_check
      _
    $region19: #{tpu_custom_call.1} parent=1 // pred_check_branch
      %2461 = sbr.rel (0) target = $region21
    $region20: #{tpu_custom_call.1} parent=1 // pred_region
      %2462 = dma.done [#allocation3], 16
    $region21: #{tpu_custom_call.1} parent=1 // pred_fallthru
      _
    %2463 = vsyncpa [#allocation3], 1

</llo_original>
